<compile_context>
chip_gen: v5e
topology: v5e:2x2
jax: 0.10.0
libtpu: 0.0.40
codegen_flags: <defaults>
</compile_context>

<pallas_src>
import functools

import jax
import jax.numpy as jnp
from jax.experimental import pallas as pl
from jax.experimental.pallas import tpu as pltpu


def _vmem_limit_bytes():
    # Derive the scoped-VMEM limit from the chip (v7x: 64 MiB/TC, v5e/v6e: 128 MiB),
    # leaving headroom; fall back to a safe default if the query is unavailable.
    try:
        cap = pltpu.get_tpu_info().vmem_capacity_bytes
        return int(min(cap * 3 // 4, 96 * 1024 * 1024))
    except Exception:
        return 32 * 1024 * 1024


# ----------------------------------------------------------------------------
# Fused ModuleBlock kernel (one grid step per batch element)
# ----------------------------------------------------------------------------

def _module_block_kernel(
    xm_ref, xb_ref,                       # (1, T, D) activations
    w_fb_ref,                             # (D, D)  bf16, tanh(gate_fb) pre-folded
    cross_ln_ref,                         # (1, D)  f32
    w_a_ref,                              # (D, D + 2*split) bf16  [Wq | Wk_lo | Wv_lo]
    w_b_ref,                              # (D, 2*(D-split)) bf16  [Wk_hi | Wv_hi]
    rot_ref,                              # (D, D)  f32 block-diag rotate-half matrix
    cos_ref, sin_ref,                     # (T, D)  f32 per-head-tiled rotary tables
    w_o_ref,                              # (D, D)  bf16, 0.5*(Wo_self + Wo_cross)
    drv_g_ref, drv_gb_ref, drv_w_ref,     # highway gate / bias / value
    ln1_ref, ln2_ref,                     # (1, D)  Gemma RMSNorm weights
    w_gate_ref, w_up_ref, w_down_ref,     # Gemma GeGLU MLP weights (bf16)
    out_ref, delta_ref,                   # (1, T, D) outputs
    *, n_heads, head_dim, n_self, eps_cross, eps_blk):
    D = n_heads * head_dim
    split = n_self * head_dim
    scale = head_dim ** -0.5

    xm = xm_ref[0].astype(jnp.float32)    # (T, D)
    xb = xb_ref[0].astype(jnp.float32)

    def mm(x, w_ref):
        # bf16 MXU feed, f32 accumulation
        return jnp.dot(x.astype(jnp.bfloat16), w_ref[...],
                       preferred_element_type=jnp.float32)

    def rmsnorm(x, w_ref, eps, gemma):
        inv = jax.lax.rsqrt(jnp.mean(x * x, axis=-1, keepdims=True) + eps)
        w = w_ref[...].astype(jnp.float32)
        if gemma:                          # Gemma-style RMSNorm uses (1 + weight)
            w = w + 1.0
        return (x * inv) * w

    # --- feedback path: delta = tanh(gate_fb) * w_fb(x_mod)  (gate folded into W_fb) ---
    delta_ref[0, :, :] = mm(xm, w_fb_ref).astype(delta_ref.dtype)

    # --- hybrid attention: cross RMSNorm + pre-routed fused QKV projections ---
    q_in = rmsnorm(xm, cross_ln_ref, eps_cross, gemma=False)

    a = mm(q_in, w_a_ref)                  # [q | k_self[:, :split] | v_self[:, :split]]
    b = mm(xb, w_b_ref)                    # [k_cross[:, split:] | v_cross[:, split:]]
    q = a[:, :D]
    k = jnp.concatenate([a[:, D:D + split], b[:, :D - split]], axis=-1)
    v = jnp.concatenate([a[:, D + split:], b[:, D - split:]], axis=-1)

    # RoPE: x*cos + rotate_half(x)*sin; rotate_half is a block-diagonal matmul (MXU).
    cos = cos_ref[...]
    sin = sin_ref[...]
    rot = rot_ref[...]
    q = q * cos + jnp.dot(q, rot, preferred_element_type=jnp.float32) * sin
    k = k * cos + jnp.dot(k, rot, preferred_element_type=jnp.float32) * sin

    # Per-head attention on the lane-dense (T, H*Dh) layout; head outputs are
    # concatenated so the result is consumed/stored as one lane-dense block.
    # TODO(synk): for long T / many heads this should become a flash-style kernel with
    # a kv grid axis and head-batched dot_general instead of the static per-head loop.
    head_outs = []
    for h in range(n_heads):
        lo = h * head_dim
        qh = q[:, lo:lo + head_dim].astype(jnp.bfloat16)
        kh = k[:, lo:lo + head_dim].astype(jnp.bfloat16)
        vh = v[:, lo:lo + head_dim].astype(jnp.bfloat16)
        s = jax.lax.dot_general(qh, kh, (((1,), (1,)), ((), ())),
                                preferred_element_type=jnp.float32) * scale
        s = s - jnp.max(s, axis=-1, keepdims=True)
        p = jnp.exp(s)
        p = p / jnp.sum(p, axis=-1, keepdims=True)     # exact softmax
        head_outs.append(jnp.dot(p.astype(jnp.bfloat16), vh,
                                 preferred_element_type=jnp.float32))
    attn = jnp.concatenate(head_outs, axis=-1)          # (T, D)

    # x1 = x_mod + 0.5*(o_proj_self + o_proj_cross)(attn)   (weights pre-fused)
    x1 = xm + mm(attn, w_o_ref)

    # x2 = x1 + sigmoid(x_back @ Wg + bg) * (x_back @ Ww)    (GatedHighway on x_back)
    gate = jax.nn.sigmoid(mm(xb, drv_g_ref) + drv_gb_ref[...].astype(jnp.float32))
    x2 = x1 + gate * mm(xb, drv_w_ref)

    # Wrapped Gemma decoder block with self_attn := nn.Identity().
    # TODO(synk): nn.Identity() would not literally accept the attention kwargs inside
    # GemmaDecoderLayer; interpreted as "attention output = input_layernorm(hidden)",
    # i.e. x = x + ln1(x), followed by post-LN + GeGLU MLP + residual.
    xa = x2 + rmsnorm(x2, ln1_ref, eps_blk, gemma=True)
    h_mlp = rmsnorm(xa, ln2_ref, eps_blk, gemma=True)
    hg = (jax.nn.gelu(mm(h_mlp, w_gate_ref), approximate=True)   # gelu_pytorch_tanh
          * mm(h_mlp, w_up_ref))
    out_ref[0, :, :] = (xa + mm(hg, w_down_ref)).astype(out_ref.dtype)


def module_block_forward(x_mod, x_back, fp, *, n_heads, head_dim, n_self):
    B, T, D = x_mod.shape

    def full2d(arr):
        return pl.BlockSpec(arr.shape, lambda b: (0, 0))

    kernel = functools.partial(
        _module_block_kernel, n_heads=n_heads, head_dim=head_dim, n_self=n_self,
        eps_cross=1e-5, eps_blk=1e-6)

    in_specs = [
        pl.BlockSpec((1, T, D), lambda b: (b, 0, 0)),   # x_mod
        pl.BlockSpec((1, T, D), lambda b: (b, 0, 0)),   # x_back
        full2d(fp["w_fb"]),
        full2d(fp["cross_ln"]),
        full2d(fp["w_a"]),
        full2d(fp["w_b"]),
        full2d(fp["rot"]),
        full2d(fp["cos"]),
        full2d(fp["sin"]),
        full2d(fp["w_o"]),
        full2d(fp["drv_g"]),
        full2d(fp["drv_gb"]),
        full2d(fp["drv_w"]),
        full2d(fp["ln1"]),
        full2d(fp["ln2"]),
        full2d(fp["w_gate"]),
        full2d(fp["w_up"]),
        full2d(fp["w_down"]),
    ]
    out_specs = (
        pl.BlockSpec((1, T, D), lambda b: (b, 0, 0)),   # out
        pl.BlockSpec((1, T, D), lambda b: (b, 0, 0)),   # delta
    )
    out_shape = (
        jax.ShapeDtypeStruct((B, T, D), jnp.float32),
        jax.ShapeDtypeStruct((B, T, D), jnp.float32),
    )
    out, delta = pl.pallas_call(
        kernel,
        grid=(B,),
        in_specs=in_specs,
        out_specs=out_specs,
        out_shape=out_shape,
        compiler_params=pltpu.CompilerParams(
            dimension_semantics=("parallel",),          # one batch element per TC (v7x)
            vmem_limit_bytes=_vmem_limit_bytes()),
    )(x_mod, x_back, fp["w_fb"], fp["cross_ln"], fp["w_a"], fp["w_b"], fp["rot"],
      fp["cos"], fp["sin"], fp["w_o"], fp["drv_g"], fp["drv_gb"], fp["drv_w"],
      fp["ln1"], fp["ln2"], fp["w_gate"], fp["w_up"], fp["w_down"])
    return out, delta


# ----------------------------------------------------------------------------
# Parameter construction / fusion (plain JAX, done once)
# ----------------------------------------------------------------------------

def init_raw_params(key, D, F):
    keys = iter(jax.random.split(key, 20))

    def w(shape, scale=0.05):
        return scale * jax.random.normal(next(keys), shape, jnp.float32)

    # NOTE: the PyTorch module zero-initializes w_fb / gate_fb / driver weights;
    # random values are used here so the test exercises non-trivial numerics.
    return dict(
        w_fb=w((D, D)), gate_fb=w((1,), 0.5),
        cross_ln=1.0 + w((D,)),
        wq=w((D, D)), wk_self=w((D, D)), wv_self=w((D, D)),
        wk_cross=w((D, D)), wv_cross=w((D, D)),
        wo_self=w((D, D)), wo_cross=w((D, D)),
        drv_w=w((D, D)), drv_g=w((D, D)), drv_gb=w((D,)),
        blk_ln1=w((D,)), blk_ln2=w((D,)),
        blk_gate=w((D, F)), blk_up=w((D, F)), blk_down=w((F, D)),
    )


def fuse_params(raw, *, T, n_heads, head_dim, rope_base=10000.0):
    D = n_heads * head_dim
    n_self = n_heads // 2
    split = n_self * head_dim

    def bf16(x):
        return x.astype(jnp.bfloat16)

    # Pre-routed fused projections (mirror=False -> self heads are 0..n_self-1):
    #   x_q path:   [Wq | Wk_self[:, :split] | Wv_self[:, :split]]
    #   x_kv path:  [Wk_cross[:, split:] | Wv_cross[:, split:]]
    w_a = jnp.concatenate([raw["wq"], raw["wk_self"][:, :split],
                           raw["wv_self"][:, :split]], axis=1)
    w_b = jnp.concatenate([raw["wk_cross"][:, split:],
                           raw["wv_cross"][:, split:]], axis=1)

    # Rotary tables tiled to the lane-dense (T, H*Dh) layout + block-diagonal
    # rotate-half matrix (so RoPE runs on the MXU inside the kernel).
    inv_freq = 1.0 / (rope_base ** (jnp.arange(0, head_dim, 2, dtype=jnp.float32)
                                    / head_dim))
    freqs = jnp.outer(jnp.arange(T, dtype=jnp.float32), inv_freq)   # (T, Dh/2)
    emb = jnp.concatenate([freqs, freqs], axis=-1)                  # (T, Dh)
    cos = jnp.tile(jnp.cos(emb), (1, n_heads))                      # (T, D)
    sin = jnp.tile(jnp.sin(emb), (1, n_heads))
    half = head_dim // 2
    rh = jnp.zeros((head_dim, head_dim), jnp.float32)
    rh = rh.at[half:, :half].set(-jnp.eye(half, dtype=jnp.float32))
    rh = rh.at[:half, half:].set(jnp.eye(half, dtype=jnp.float32))
    rot = jnp.kron(jnp.eye(n_heads, dtype=jnp.float32), rh)         # (D, D)

    return dict(
        w_fb=bf16(jnp.tanh(raw["gate_fb"]) * raw["w_fb"]),  # fold tanh(gate_fb) into W_fb
        cross_ln=raw["cross_ln"].reshape(1, D),
        w_a=bf16(w_a), w_b=bf16(w_b),
        rot=rot, cos=cos, sin=sin,
        # 0.5*(Wo_self + Wo_cross): exact, both are applied to the same attention output
        w_o=bf16(0.5 * (raw["wo_self"] + raw["wo_cross"])),
        drv_g=bf16(raw["drv_g"]), drv_gb=raw["drv_gb"].reshape(1, D),
        drv_w=bf16(raw["drv_w"]),
        ln1=raw["blk_ln1"].reshape(1, D), ln2=raw["blk_ln2"].reshape(1, D),
        w_gate=bf16(raw["blk_gate"]), w_up=bf16(raw["blk_up"]),
        w_down=bf16(raw["blk_down"]),
    )


# ----------------------------------------------------------------------------
# Main
# ----------------------------------------------------------------------------

if __name__ == "__main__":
    B, T = 2, 8
    H, DH, F = 4, 8, 64          # heads, head_dim, ffn
    D = H * DH                   # hidden = 32

    key = jax.random.PRNGKey(0)
    k_par, k_mod, k_back = jax.random.split(key, 3)
    raw = init_raw_params(k_par, D, F)
    fp = fuse_params(raw, T=T, n_heads=H, head_dim=DH)

    x_mod = jax.random.normal(k_mod, (B, T, D), jnp.float32)
    x_back = jax.random.normal(k_back, (B, T, D), jnp.float32)

    fwd = jax.jit(functools.partial(module_block_forward,
                                    n_heads=H, head_dim=DH, n_self=H // 2))
    out, delta = fwd(x_mod, x_back, fp)
    jax.block_until_ready((out, delta))

    assert out.shape == (B, T, D) and delta.shape == (B, T, D)
    assert bool(jnp.all(jnp.isfinite(out))) and bool(jnp.all(jnp.isfinite(delta)))
    print("KERNEL_OK")
</pallas_src>

<mosaic_0001>
module attributes {stable_mosaic.version = 11 : i64} {
  func.func @_module_block_kernel(%arg0: i32, %arg1: memref<1x8x32xf32, #tpu.memory_space<vmem>>, %arg2: memref<1x8x32xf32, #tpu.memory_space<vmem>>, %arg3: memref<32x32xbf16, #tpu.memory_space<vmem>>, %arg4: memref<1x32xf32, #tpu.memory_space<vmem>>, %arg5: memref<32x64xbf16, #tpu.memory_space<vmem>>, %arg6: memref<32x32xbf16, #tpu.memory_space<vmem>>, %arg7: memref<32x32xf32, #tpu.memory_space<vmem>>, %arg8: memref<8x32xf32, #tpu.memory_space<vmem>>, %arg9: memref<8x32xf32, #tpu.memory_space<vmem>>, %arg10: memref<32x32xbf16, #tpu.memory_space<vmem>>, %arg11: memref<32x32xbf16, #tpu.memory_space<vmem>>, %arg12: memref<1x32xf32, #tpu.memory_space<vmem>>, %arg13: memref<32x32xbf16, #tpu.memory_space<vmem>>, %arg14: memref<1x32xf32, #tpu.memory_space<vmem>>, %arg15: memref<1x32xf32, #tpu.memory_space<vmem>>, %arg16: memref<32x64xbf16, #tpu.memory_space<vmem>>, %arg17: memref<32x64xbf16, #tpu.memory_space<vmem>>, %arg18: memref<64x32xbf16, #tpu.memory_space<vmem>>, %arg19: memref<1x8x32xf32, #tpu.memory_space<vmem>>, %arg20: memref<1x8x32xf32, #tpu.memory_space<vmem>>) attributes {dimension_semantics = [#tpu.dimension_semantics<parallel>], iteration_bounds = array<i64: 2>, scalar_prefetch = 0 : i64, scratch_operands = 0 : i64, tpu.core_type = #tpu.core_type<tc>, window_params = [{transform_indices = @transform_0, window_bounds = array<i64: 1, 8, 32>}, {transform_indices = @transform_1, window_bounds = array<i64: 1, 8, 32>}, {pipeline_mode = #tpu.pipeline_mode<synchronous>, transform_indices = @transform_2, window_bounds = array<i64: 32, 32>}, {pipeline_mode = #tpu.pipeline_mode<synchronous>, transform_indices = @transform_3, window_bounds = array<i64: 1, 32>}, {pipeline_mode = #tpu.pipeline_mode<synchronous>, transform_indices = @transform_4, window_bounds = array<i64: 32, 64>}, {pipeline_mode = #tpu.pipeline_mode<synchronous>, transform_indices = @transform_5, window_bounds = array<i64: 32, 32>}, {pipeline_mode = #tpu.pipeline_mode<synchronous>, transform_indices = @transform_6, window_bounds = array<i64: 32, 32>}, {pipeline_mode = #tpu.pipeline_mode<synchronous>, transform_indices = @transform_7, window_bounds = array<i64: 8, 32>}, {pipeline_mode = #tpu.pipeline_mode<synchronous>, transform_indices = @transform_8, window_bounds = array<i64: 8, 32>}, {pipeline_mode = #tpu.pipeline_mode<synchronous>, transform_indices = @transform_9, window_bounds = array<i64: 32, 32>}, {pipeline_mode = #tpu.pipeline_mode<synchronous>, transform_indices = @transform_10, window_bounds = array<i64: 32, 32>}, {pipeline_mode = #tpu.pipeline_mode<synchronous>, transform_indices = @transform_11, window_bounds = array<i64: 1, 32>}, {pipeline_mode = #tpu.pipeline_mode<synchronous>, transform_indices = @transform_12, window_bounds = array<i64: 32, 32>}, {pipeline_mode = #tpu.pipeline_mode<synchronous>, transform_indices = @transform_13, window_bounds = array<i64: 1, 32>}, {pipeline_mode = #tpu.pipeline_mode<synchronous>, transform_indices = @transform_14, window_bounds = array<i64: 1, 32>}, {pipeline_mode = #tpu.pipeline_mode<synchronous>, transform_indices = @transform_15, window_bounds = array<i64: 32, 64>}, {pipeline_mode = #tpu.pipeline_mode<synchronous>, transform_indices = @transform_16, window_bounds = array<i64: 32, 64>}, {pipeline_mode = #tpu.pipeline_mode<synchronous>, transform_indices = @transform_17, window_bounds = array<i64: 64, 32>}, {transform_indices = @transform_18, window_bounds = array<i64: 1, 8, 32>}, {transform_indices = @transform_19, window_bounds = array<i64: 1, 8, 32>}]} {
    %c0 = arith.constant 0 : index
    %c0_0 = arith.constant 0 : index
    %c0_1 = arith.constant 0 : index
    %0 = vector.load %arg1[%c0, %c0_0, %c0_1] : memref<1x8x32xf32, #tpu.memory_space<vmem>>, vector<1x8x32xf32>
    %1 = vector.shape_cast %0 : vector<1x8x32xf32> to vector<8x32xf32>
    %c0_2 = arith.constant 0 : index
    %c0_3 = arith.constant 0 : index
    %c0_4 = arith.constant 0 : index
    %2 = vector.load %arg2[%c0_2, %c0_3, %c0_4] : memref<1x8x32xf32, #tpu.memory_space<vmem>>, vector<1x8x32xf32>
    %3 = vector.shape_cast %2 : vector<1x8x32xf32> to vector<8x32xf32>
    %4 = arith.truncf %1 : vector<8x32xf32> to vector<8x32xbf16>
    %c0_5 = arith.constant 0 : index
    %c0_6 = arith.constant 0 : index
    %5 = vector.load %arg3[%c0_5, %c0_6] : memref<32x32xbf16, #tpu.memory_space<vmem>>, vector<32x32xbf16>
    %cst = arith.constant dense<0.000000e+00> : vector<8x32xf32>
    %6 = tpu.matmul %4, %5, %cst {dimension_numbers = #tpu.dot_dimension_numbers<[1], [0], [0], [1], [0, 0, 1, 1], [], []>} : vector<8x32xbf16>, vector<32x32xbf16>, vector<8x32xf32> -> vector<8x32xf32>
    %c0_7 = arith.constant 0 : index
    %c0_8 = arith.constant 0 : index
    %c0_9 = arith.constant 0 : index
    %7 = vector.load %arg20[%c0_7, %c0_8, %c0_9] : memref<1x8x32xf32, #tpu.memory_space<vmem>>, vector<1x8x32xf32>
    %8 = vector.shape_cast %7 : vector<1x8x32xf32> to vector<8x32xf32>
    %9 = vector.shape_cast %6 : vector<8x32xf32> to vector<1x8x32xf32>
    tpu.vector_store %arg20[%c0_7, %c0_8, %c0_9], %9 {strides = array<i32>} : memref<1x8x32xf32, #tpu.memory_space<vmem>>, vector<1x8x32xf32>,
    %10 = arith.mulf %1, %1 : vector<8x32xf32>
    %cst_10 = arith.constant dense<0.000000e+00> : vector<8xf32>
    %11 = vector.multi_reduction <add>, %10, %cst_10 [1] : vector<8x32xf32> to vector<8xf32>
    %12 = vector.shape_cast %11 : vector<8xf32> to vector<8x1xf32>
    %cst_11 = arith.constant 3.200000e+01 : f32
    %13 = vector.broadcast %cst_11 : f32 to vector<8x1xf32>
    %14 = arith.divf %12, %13 : vector<8x1xf32>
    %cst_12 = arith.constant 9.99999974E-6 : f32
    %15 = vector.broadcast %cst_12 : f32 to vector<8x1xf32>
    %16 = arith.addf %14, %15 : vector<8x1xf32>
    %17 = math.rsqrt %16 : vector<8x1xf32>
    %c0_13 = arith.constant 0 : index
    %c0_14 = arith.constant 0 : index
    %18 = vector.load %arg4[%c0_13, %c0_14] : memref<1x32xf32, #tpu.memory_space<vmem>>, vector<1x32xf32>
    %19 = vector.broadcast %17 : vector<8x1xf32> to vector<8x32xf32>
    %20 = arith.mulf %1, %19 : vector<8x32xf32>
    %21 = vector.broadcast %18 : vector<1x32xf32> to vector<8x32xf32>
    %22 = arith.mulf %20, %21 : vector<8x32xf32>
    %23 = arith.truncf %22 : vector<8x32xf32> to vector<8x32xbf16>
    %c0_15 = arith.constant 0 : index
    %c0_16 = arith.constant 0 : index
    %24 = vector.load %arg5[%c0_15, %c0_16] : memref<32x64xbf16, #tpu.memory_space<vmem>>, vector<32x64xbf16>
    %cst_17 = arith.constant dense<0.000000e+00> : vector<8x64xf32>
    %25 = tpu.matmul %23, %24, %cst_17 {dimension_numbers = #tpu.dot_dimension_numbers<[1], [0], [0], [1], [0, 0, 1, 1], [], []>} : vector<8x32xbf16>, vector<32x64xbf16>, vector<8x64xf32> -> vector<8x64xf32>
    %26 = arith.truncf %3 : vector<8x32xf32> to vector<8x32xbf16>
    %c0_18 = arith.constant 0 : index
    %c0_19 = arith.constant 0 : index
    %27 = vector.load %arg6[%c0_18, %c0_19] : memref<32x32xbf16, #tpu.memory_space<vmem>>, vector<32x32xbf16>
    %cst_20 = arith.constant dense<0.000000e+00> : vector<8x32xf32>
    %28 = tpu.matmul %26, %27, %cst_20 {dimension_numbers = #tpu.dot_dimension_numbers<[1], [0], [0], [1], [0, 0, 1, 1], [], []>} : vector<8x32xbf16>, vector<32x32xbf16>, vector<8x32xf32> -> vector<8x32xf32>
    %29 = vector.extract_strided_slice %25 {offsets = [0, 0], sizes = [8, 32], strides = [1, 1]} : vector<8x64xf32> to vector<8x32xf32>
    %30 = vector.extract_strided_slice %25 {offsets = [0, 32], sizes = [8, 16], strides = [1, 1]} : vector<8x64xf32> to vector<8x16xf32>
    %31 = vector.extract_strided_slice %28 {offsets = [0, 0], sizes = [8, 16], strides = [1, 1]} : vector<8x32xf32> to vector<8x16xf32>
    %32 = tpu.concatenate %30, %31 in 1 : vector<8x16xf32>, vector<8x16xf32> -> vector<8x32xf32>
    %33 = vector.extract_strided_slice %25 {offsets = [0, 48], sizes = [8, 16], strides = [1, 1]} : vector<8x64xf32> to vector<8x16xf32>
    %34 = vector.extract_strided_slice %28 {offsets = [0, 16], sizes = [8, 16], strides = [1, 1]} : vector<8x32xf32> to vector<8x16xf32>
    %35 = tpu.concatenate %33, %34 in 1 : vector<8x16xf32>, vector<8x16xf32> -> vector<8x32xf32>
    %c0_21 = arith.constant 0 : index
    %c0_22 = arith.constant 0 : index
    %36 = vector.load %arg8[%c0_21, %c0_22] : memref<8x32xf32, #tpu.memory_space<vmem>>, vector<8x32xf32>
    %c0_23 = arith.constant 0 : index
    %c0_24 = arith.constant 0 : index
    %37 = vector.load %arg9[%c0_23, %c0_24] : memref<8x32xf32, #tpu.memory_space<vmem>>, vector<8x32xf32>
    %c0_25 = arith.constant 0 : index
    %c0_26 = arith.constant 0 : index
    %38 = vector.load %arg7[%c0_25, %c0_26] : memref<32x32xf32, #tpu.memory_space<vmem>>, vector<32x32xf32>
    %39 = arith.mulf %29, %36 : vector<8x32xf32>
    %cst_27 = arith.constant dense<0.000000e+00> : vector<8x32xf32>
    %40 = tpu.matmul %29, %38, %cst_27 {dimension_numbers = #tpu.dot_dimension_numbers<[1], [0], [0], [1], [0, 0, 1, 1], [], []>} : vector<8x32xf32>, vector<32x32xf32>, vector<8x32xf32> -> vector<8x32xf32>
    %41 = arith.mulf %40, %37 : vector<8x32xf32>
    %42 = arith.addf %39, %41 : vector<8x32xf32>
    %43 = arith.mulf %32, %36 : vector<8x32xf32>
    %cst_28 = arith.constant dense<0.000000e+00> : vector<8x32xf32>
    %44 = tpu.matmul %32, %38, %cst_28 {dimension_numbers = #tpu.dot_dimension_numbers<[1], [0], [0], [1], [0, 0, 1, 1], [], []>} : vector<8x32xf32>, vector<32x32xf32>, vector<8x32xf32> -> vector<8x32xf32>
    %45 = arith.mulf %44, %37 : vector<8x32xf32>
    %46 = arith.addf %43, %45 : vector<8x32xf32>
    %47 = vector.extract_strided_slice %42 {offsets = [0, 0], sizes = [8, 8], strides = [1, 1]} : vector<8x32xf32> to vector<8x8xf32>
    %48 = arith.truncf %47 : vector<8x8xf32> to vector<8x8xbf16>
    %49 = vector.extract_strided_slice %46 {offsets = [0, 0], sizes = [8, 8], strides = [1, 1]} : vector<8x32xf32> to vector<8x8xf32>
    %50 = arith.truncf %49 : vector<8x8xf32> to vector<8x8xbf16>
    %51 = vector.extract_strided_slice %35 {offsets = [0, 0], sizes = [8, 8], strides = [1, 1]} : vector<8x32xf32> to vector<8x8xf32>
    %52 = arith.truncf %51 : vector<8x8xf32> to vector<8x8xbf16>
    %cst_29 = arith.constant dense<0.000000e+00> : vector<8x8xf32>
    %53 = tpu.matmul %48, %50, %cst_29 {dimension_numbers = #tpu.dot_dimension_numbers<[1], [1], [0], [0], [0, 0, 1, 0], [], []>} : vector<8x8xbf16>, vector<8x8xbf16>, vector<8x8xf32> -> vector<8x8xf32>
    %cst_30 = arith.constant 0.353553385 : f32
    %54 = vector.broadcast %cst_30 : f32 to vector<8x8xf32>
    %55 = arith.mulf %53, %54 : vector<8x8xf32>
    %cst_31 = arith.constant dense<0xFF800000> : vector<8xf32>
    %56 = vector.multi_reduction <maximumf>, %55, %cst_31 [1] : vector<8x8xf32> to vector<8xf32>
    %57 = vector.shape_cast %56 : vector<8xf32> to vector<8x1xf32>
    %58 = vector.broadcast %57 : vector<8x1xf32> to vector<8x8xf32>
    %59 = arith.subf %55, %58 : vector<8x8xf32>
    %60 = math.exp %59 : vector<8x8xf32>
    %cst_32 = arith.constant dense<0.000000e+00> : vector<8xf32>
    %61 = vector.multi_reduction <add>, %60, %cst_32 [1] : vector<8x8xf32> to vector<8xf32>
    %62 = vector.shape_cast %61 : vector<8xf32> to vector<8x1xf32>
    %63 = vector.broadcast %62 : vector<8x1xf32> to vector<8x8xf32>
    %64 = arith.divf %60, %63 : vector<8x8xf32>
    %65 = arith.truncf %64 : vector<8x8xf32> to vector<8x8xbf16>
    %cst_33 = arith.constant dense<0.000000e+00> : vector<8x8xf32>
    %66 = tpu.matmul %65, %52, %cst_33 {dimension_numbers = #tpu.dot_dimension_numbers<[1], [0], [0], [1], [0, 0, 1, 1], [], []>} : vector<8x8xbf16>, vector<8x8xbf16>, vector<8x8xf32> -> vector<8x8xf32>
    %67 = vector.extract_strided_slice %42 {offsets = [0, 8], sizes = [8, 8], strides = [1, 1]} : vector<8x32xf32> to vector<8x8xf32>
    %68 = arith.truncf %67 : vector<8x8xf32> to vector<8x8xbf16>
    %69 = vector.extract_strided_slice %46 {offsets = [0, 8], sizes = [8, 8], strides = [1, 1]} : vector<8x32xf32> to vector<8x8xf32>
    %70 = arith.truncf %69 : vector<8x8xf32> to vector<8x8xbf16>
    %71 = vector.extract_strided_slice %35 {offsets = [0, 8], sizes = [8, 8], strides = [1, 1]} : vector<8x32xf32> to vector<8x8xf32>
    %72 = arith.truncf %71 : vector<8x8xf32> to vector<8x8xbf16>
    %cst_34 = arith.constant dense<0.000000e+00> : vector<8x8xf32>
    %73 = tpu.matmul %68, %70, %cst_34 {dimension_numbers = #tpu.dot_dimension_numbers<[1], [1], [0], [0], [0, 0, 1, 0], [], []>} : vector<8x8xbf16>, vector<8x8xbf16>, vector<8x8xf32> -> vector<8x8xf32>
    %cst_35 = arith.constant 0.353553385 : f32
    %74 = vector.broadcast %cst_35 : f32 to vector<8x8xf32>
    %75 = arith.mulf %73, %74 : vector<8x8xf32>
    %cst_36 = arith.constant dense<0xFF800000> : vector<8xf32>
    %76 = vector.multi_reduction <maximumf>, %75, %cst_36 [1] : vector<8x8xf32> to vector<8xf32>
    %77 = vector.shape_cast %76 : vector<8xf32> to vector<8x1xf32>
    %78 = vector.broadcast %77 : vector<8x1xf32> to vector<8x8xf32>
    %79 = arith.subf %75, %78 : vector<8x8xf32>
    %80 = math.exp %79 : vector<8x8xf32>
    %cst_37 = arith.constant dense<0.000000e+00> : vector<8xf32>
    %81 = vector.multi_reduction <add>, %80, %cst_37 [1] : vector<8x8xf32> to vector<8xf32>
    %82 = vector.shape_cast %81 : vector<8xf32> to vector<8x1xf32>
    %83 = vector.broadcast %82 : vector<8x1xf32> to vector<8x8xf32>
    %84 = arith.divf %80, %83 : vector<8x8xf32>
    %85 = arith.truncf %84 : vector<8x8xf32> to vector<8x8xbf16>
    %cst_38 = arith.constant dense<0.000000e+00> : vector<8x8xf32>
    %86 = tpu.matmul %85, %72, %cst_38 {dimension_numbers = #tpu.dot_dimension_numbers<[1], [0], [0], [1], [0, 0, 1, 1], [], []>} : vector<8x8xbf16>, vector<8x8xbf16>, vector<8x8xf32> -> vector<8x8xf32>
    %87 = vector.extract_strided_slice %42 {offsets = [0, 16], sizes = [8, 8], strides = [1, 1]} : vector<8x32xf32> to vector<8x8xf32>
    %88 = arith.truncf %87 : vector<8x8xf32> to vector<8x8xbf16>
    %89 = vector.extract_strided_slice %46 {offsets = [0, 16], sizes = [8, 8], strides = [1, 1]} : vector<8x32xf32> to vector<8x8xf32>
    %90 = arith.truncf %89 : vector<8x8xf32> to vector<8x8xbf16>
    %91 = vector.extract_strided_slice %35 {offsets = [0, 16], sizes = [8, 8], strides = [1, 1]} : vector<8x32xf32> to vector<8x8xf32>
    %92 = arith.truncf %91 : vector<8x8xf32> to vector<8x8xbf16>
    %cst_39 = arith.constant dense<0.000000e+00> : vector<8x8xf32>
    %93 = tpu.matmul %88, %90, %cst_39 {dimension_numbers = #tpu.dot_dimension_numbers<[1], [1], [0], [0], [0, 0, 1, 0], [], []>} : vector<8x8xbf16>, vector<8x8xbf16>, vector<8x8xf32> -> vector<8x8xf32>
    %cst_40 = arith.constant 0.353553385 : f32
    %94 = vector.broadcast %cst_40 : f32 to vector<8x8xf32>
    %95 = arith.mulf %93, %94 : vector<8x8xf32>
    %cst_41 = arith.constant dense<0xFF800000> : vector<8xf32>
    %96 = vector.multi_reduction <maximumf>, %95, %cst_41 [1] : vector<8x8xf32> to vector<8xf32>
    %97 = vector.shape_cast %96 : vector<8xf32> to vector<8x1xf32>
    %98 = vector.broadcast %97 : vector<8x1xf32> to vector<8x8xf32>
    %99 = arith.subf %95, %98 : vector<8x8xf32>
    %100 = math.exp %99 : vector<8x8xf32>
    %cst_42 = arith.constant dense<0.000000e+00> : vector<8xf32>
    %101 = vector.multi_reduction <add>, %100, %cst_42 [1] : vector<8x8xf32> to vector<8xf32>
    %102 = vector.shape_cast %101 : vector<8xf32> to vector<8x1xf32>
    %103 = vector.broadcast %102 : vector<8x1xf32> to vector<8x8xf32>
    %104 = arith.divf %100, %103 : vector<8x8xf32>
    %105 = arith.truncf %104 : vector<8x8xf32> to vector<8x8xbf16>
    %cst_43 = arith.constant dense<0.000000e+00> : vector<8x8xf32>
    %106 = tpu.matmul %105, %92, %cst_43 {dimension_numbers = #tpu.dot_dimension_numbers<[1], [0], [0], [1], [0, 0, 1, 1], [], []>} : vector<8x8xbf16>, vector<8x8xbf16>, vector<8x8xf32> -> vector<8x8xf32>
    %107 = vector.extract_strided_slice %42 {offsets = [0, 24], sizes = [8, 8], strides = [1, 1]} : vector<8x32xf32> to vector<8x8xf32>
    %108 = arith.truncf %107 : vector<8x8xf32> to vector<8x8xbf16>
    %109 = vector.extract_strided_slice %46 {offsets = [0, 24], sizes = [8, 8], strides = [1, 1]} : vector<8x32xf32> to vector<8x8xf32>
    %110 = arith.truncf %109 : vector<8x8xf32> to vector<8x8xbf16>
    %111 = vector.extract_strided_slice %35 {offsets = [0, 24], sizes = [8, 8], strides = [1, 1]} : vector<8x32xf32> to vector<8x8xf32>
    %112 = arith.truncf %111 : vector<8x8xf32> to vector<8x8xbf16>
    %cst_44 = arith.constant dense<0.000000e+00> : vector<8x8xf32>
    %113 = tpu.matmul %108, %110, %cst_44 {dimension_numbers = #tpu.dot_dimension_numbers<[1], [1], [0], [0], [0, 0, 1, 0], [], []>} : vector<8x8xbf16>, vector<8x8xbf16>, vector<8x8xf32> -> vector<8x8xf32>
    %cst_45 = arith.constant 0.353553385 : f32
    %114 = vector.broadcast %cst_45 : f32 to vector<8x8xf32>
    %115 = arith.mulf %113, %114 : vector<8x8xf32>
    %cst_46 = arith.constant dense<0xFF800000> : vector<8xf32>
    %116 = vector.multi_reduction <maximumf>, %115, %cst_46 [1] : vector<8x8xf32> to vector<8xf32>
    %117 = vector.shape_cast %116 : vector<8xf32> to vector<8x1xf32>
    %118 = vector.broadcast %117 : vector<8x1xf32> to vector<8x8xf32>
    %119 = arith.subf %115, %118 : vector<8x8xf32>
    %120 = math.exp %119 : vector<8x8xf32>
    %cst_47 = arith.constant dense<0.000000e+00> : vector<8xf32>
    %121 = vector.multi_reduction <add>, %120, %cst_47 [1] : vector<8x8xf32> to vector<8xf32>
    %122 = vector.shape_cast %121 : vector<8xf32> to vector<8x1xf32>
    %123 = vector.broadcast %122 : vector<8x1xf32> to vector<8x8xf32>
    %124 = arith.divf %120, %123 : vector<8x8xf32>
    %125 = arith.truncf %124 : vector<8x8xf32> to vector<8x8xbf16>
    %cst_48 = arith.constant dense<0.000000e+00> : vector<8x8xf32>
    %126 = tpu.matmul %125, %112, %cst_48 {dimension_numbers = #tpu.dot_dimension_numbers<[1], [0], [0], [1], [0, 0, 1, 1], [], []>} : vector<8x8xbf16>, vector<8x8xbf16>, vector<8x8xf32> -> vector<8x8xf32>
    %127 = tpu.concatenate %66, %86, %106, %126 in 1 : vector<8x8xf32>, vector<8x8xf32>, vector<8x8xf32>, vector<8x8xf32> -> vector<8x32xf32>
    %128 = arith.truncf %127 : vector<8x32xf32> to vector<8x32xbf16>
    %c0_49 = arith.constant 0 : index
    %c0_50 = arith.constant 0 : index
    %129 = vector.load %arg10[%c0_49, %c0_50] : memref<32x32xbf16, #tpu.memory_space<vmem>>, vector<32x32xbf16>
    %cst_51 = arith.constant dense<0.000000e+00> : vector<8x32xf32>
    %130 = tpu.matmul %128, %129, %cst_51 {dimension_numbers = #tpu.dot_dimension_numbers<[1], [0], [0], [1], [0, 0, 1, 1], [], []>} : vector<8x32xbf16>, vector<32x32xbf16>, vector<8x32xf32> -> vector<8x32xf32>
    %131 = arith.addf %1, %130 : vector<8x32xf32>
    %132 = arith.truncf %3 : vector<8x32xf32> to vector<8x32xbf16>
    %c0_52 = arith.constant 0 : index
    %c0_53 = arith.constant 0 : index
    %133 = vector.load %arg11[%c0_52, %c0_53] : memref<32x32xbf16, #tpu.memory_space<vmem>>, vector<32x32xbf16>
    %cst_54 = arith.constant dense<0.000000e+00> : vector<8x32xf32>
    %134 = tpu.matmul %132, %133, %cst_54 {dimension_numbers = #tpu.dot_dimension_numbers<[1], [0], [0], [1], [0, 0, 1, 1], [], []>} : vector<8x32xbf16>, vector<32x32xbf16>, vector<8x32xf32> -> vector<8x32xf32>
    %c0_55 = arith.constant 0 : index
    %c0_56 = arith.constant 0 : index
    %135 = vector.load %arg12[%c0_55, %c0_56] : memref<1x32xf32, #tpu.memory_space<vmem>>, vector<1x32xf32>
    %136 = vector.broadcast %135 : vector<1x32xf32> to vector<8x32xf32>
    %137 = arith.addf %134, %136 : vector<8x32xf32>
    %138 = arith.negf %137 : vector<8x32xf32>
    %139 = math.exp %138 : vector<8x32xf32>
    %cst_57 = arith.constant 1.000000e+00 : f32
    %140 = vector.broadcast %cst_57 : f32 to vector<8x32xf32>
    %141 = arith.addf %140, %139 : vector<8x32xf32>
    %142 = arith.divf %140, %141 : vector<8x32xf32>
    %143 = arith.truncf %3 : vector<8x32xf32> to vector<8x32xbf16>
    %c0_58 = arith.constant 0 : index
    %c0_59 = arith.constant 0 : index
    %144 = vector.load %arg13[%c0_58, %c0_59] : memref<32x32xbf16, #tpu.memory_space<vmem>>, vector<32x32xbf16>
    %cst_60 = arith.constant dense<0.000000e+00> : vector<8x32xf32>
    %145 = tpu.matmul %143, %144, %cst_60 {dimension_numbers = #tpu.dot_dimension_numbers<[1], [0], [0], [1], [0, 0, 1, 1], [], []>} : vector<8x32xbf16>, vector<32x32xbf16>, vector<8x32xf32> -> vector<8x32xf32>
    %146 = arith.mulf %142, %145 : vector<8x32xf32>
    %147 = arith.addf %131, %146 : vector<8x32xf32>
    %148 = arith.mulf %147, %147 : vector<8x32xf32>
    %cst_61 = arith.constant dense<0.000000e+00> : vector<8xf32>
    %149 = vector.multi_reduction <add>, %148, %cst_61 [1] : vector<8x32xf32> to vector<8xf32>
    %150 = vector.shape_cast %149 : vector<8xf32> to vector<8x1xf32>
    %cst_62 = arith.constant 3.200000e+01 : f32
    %151 = vector.broadcast %cst_62 : f32 to vector<8x1xf32>
    %152 = arith.divf %150, %151 : vector<8x1xf32>
    %cst_63 = arith.constant 9.99999997E-7 : f32
    %153 = vector.broadcast %cst_63 : f32 to vector<8x1xf32>
    %154 = arith.addf %152, %153 : vector<8x1xf32>
    %155 = math.rsqrt %154 : vector<8x1xf32>
    %c0_64 = arith.constant 0 : index
    %c0_65 = arith.constant 0 : index
    %156 = vector.load %arg14[%c0_64, %c0_65] : memref<1x32xf32, #tpu.memory_space<vmem>>, vector<1x32xf32>
    %cst_66 = arith.constant 1.000000e+00 : f32
    %157 = vector.broadcast %cst_66 : f32 to vector<1x32xf32>
    %158 = arith.addf %156, %157 : vector<1x32xf32>
    %159 = vector.broadcast %155 : vector<8x1xf32> to vector<8x32xf32>
    %160 = arith.mulf %147, %159 : vector<8x32xf32>
    %161 = vector.broadcast %158 : vector<1x32xf32> to vector<8x32xf32>
    %162 = arith.mulf %160, %161 : vector<8x32xf32>
    %163 = arith.addf %147, %162 : vector<8x32xf32>
    %164 = arith.mulf %163, %163 : vector<8x32xf32>
    %cst_67 = arith.constant dense<0.000000e+00> : vector<8xf32>
    %165 = vector.multi_reduction <add>, %164, %cst_67 [1] : vector<8x32xf32> to vector<8xf32>
    %166 = vector.shape_cast %165 : vector<8xf32> to vector<8x1xf32>
    %cst_68 = arith.constant 3.200000e+01 : f32
    %167 = vector.broadcast %cst_68 : f32 to vector<8x1xf32>
    %168 = arith.divf %166, %167 : vector<8x1xf32>
    %cst_69 = arith.constant 9.99999997E-7 : f32
    %169 = vector.broadcast %cst_69 : f32 to vector<8x1xf32>
    %170 = arith.addf %168, %169 : vector<8x1xf32>
    %171 = math.rsqrt %170 : vector<8x1xf32>
    %c0_70 = arith.constant 0 : index
    %c0_71 = arith.constant 0 : index
    %172 = vector.load %arg15[%c0_70, %c0_71] : memref<1x32xf32, #tpu.memory_space<vmem>>, vector<1x32xf32>
    %cst_72 = arith.constant 1.000000e+00 : f32
    %173 = vector.broadcast %cst_72 : f32 to vector<1x32xf32>
    %174 = arith.addf %172, %173 : vector<1x32xf32>
    %175 = vector.broadcast %171 : vector<8x1xf32> to vector<8x32xf32>
    %176 = arith.mulf %163, %175 : vector<8x32xf32>
    %177 = vector.broadcast %174 : vector<1x32xf32> to vector<8x32xf32>
    %178 = arith.mulf %176, %177 : vector<8x32xf32>
    %179 = arith.truncf %178 : vector<8x32xf32> to vector<8x32xbf16>
    %c0_73 = arith.constant 0 : index
    %c0_74 = arith.constant 0 : index
    %180 = vector.load %arg16[%c0_73, %c0_74] : memref<32x64xbf16, #tpu.memory_space<vmem>>, vector<32x64xbf16>
    %cst_75 = arith.constant dense<0.000000e+00> : vector<8x64xf32>
    %181 = tpu.matmul %179, %180, %cst_75 {dimension_numbers = #tpu.dot_dimension_numbers<[1], [0], [0], [1], [0, 0, 1, 1], [], []>} : vector<8x32xbf16>, vector<32x64xbf16>, vector<8x64xf32> -> vector<8x64xf32>
    %182 = arith.mulf %181, %181 : vector<8x64xf32>
    %183 = arith.mulf %181, %182 : vector<8x64xf32>
    %cst_76 = arith.constant 4.471500e-02 : f32
    %184 = vector.broadcast %cst_76 : f32 to vector<8x64xf32>
    %185 = arith.mulf %184, %183 : vector<8x64xf32>
    %186 = arith.addf %181, %185 : vector<8x64xf32>
    %cst_77 = arith.constant 0.797884583 : f32
    %187 = vector.broadcast %cst_77 : f32 to vector<8x64xf32>
    %188 = arith.mulf %187, %186 : vector<8x64xf32>
    %189 = math.tanh %188 : vector<8x64xf32>
    %cst_78 = arith.constant 1.000000e+00 : f32
    %190 = vector.broadcast %cst_78 : f32 to vector<8x64xf32>
    %191 = arith.addf %190, %189 : vector<8x64xf32>
    %cst_79 = arith.constant 5.000000e-01 : f32
    %192 = vector.broadcast %cst_79 : f32 to vector<8x64xf32>
    %193 = arith.mulf %192, %191 : vector<8x64xf32>
    %194 = arith.mulf %181, %193 : vector<8x64xf32>
    %195 = arith.truncf %178 : vector<8x32xf32> to vector<8x32xbf16>
    %c0_80 = arith.constant 0 : index
    %c0_81 = arith.constant 0 : index
    %196 = vector.load %arg17[%c0_80, %c0_81] : memref<32x64xbf16, #tpu.memory_space<vmem>>, vector<32x64xbf16>
    %cst_82 = arith.constant dense<0.000000e+00> : vector<8x64xf32>
    %197 = tpu.matmul %195, %196, %cst_82 {dimension_numbers = #tpu.dot_dimension_numbers<[1], [0], [0], [1], [0, 0, 1, 1], [], []>} : vector<8x32xbf16>, vector<32x64xbf16>, vector<8x64xf32> -> vector<8x64xf32>
    %198 = arith.mulf %194, %197 : vector<8x64xf32>
    %199 = arith.truncf %198 : vector<8x64xf32> to vector<8x64xbf16>
    %c0_83 = arith.constant 0 : index
    %c0_84 = arith.constant 0 : index
    %200 = vector.load %arg18[%c0_83, %c0_84] : memref<64x32xbf16, #tpu.memory_space<vmem>>, vector<64x32xbf16>
    %cst_85 = arith.constant dense<0.000000e+00> : vector<8x32xf32>
    %201 = tpu.matmul %199, %200, %cst_85 {dimension_numbers = #tpu.dot_dimension_numbers<[1], [0], [0], [1], [0, 0, 1, 1], [], []>} : vector<8x64xbf16>, vector<64x32xbf16>, vector<8x32xf32> -> vector<8x32xf32>
    %202 = arith.addf %163, %201 : vector<8x32xf32>
    %c0_86 = arith.constant 0 : index
    %c0_87 = arith.constant 0 : index
    %c0_88 = arith.constant 0 : index
    %203 = vector.load %arg19[%c0_86, %c0_87, %c0_88] : memref<1x8x32xf32, #tpu.memory_space<vmem>>, vector<1x8x32xf32>
    %204 = vector.shape_cast %203 : vector<1x8x32xf32> to vector<8x32xf32>
    %205 = vector.shape_cast %202 : vector<8x32xf32> to vector<1x8x32xf32>
    tpu.vector_store %arg19[%c0_86, %c0_87, %c0_88], %205 {strides = array<i32>} : memref<1x8x32xf32, #tpu.memory_space<vmem>>, vector<1x8x32xf32>,
    return
  }
  func.func @transform_0(%arg0: i32) -> (i32, i32, i32) {
    %c0_i32 = arith.constant 0 : i32
    %c0_i32_0 = arith.constant 0 : i32
    %c0_i32_1 = arith.constant 0 : i32
    return %arg0, %c0_i32, %c0_i32_0 : i32, i32, i32
  }
  func.func @transform_1(%arg0: i32) -> (i32, i32, i32) {
    %c0_i32 = arith.constant 0 : i32
    %c0_i32_0 = arith.constant 0 : i32
    %c0_i32_1 = arith.constant 0 : i32
    return %arg0, %c0_i32, %c0_i32_0 : i32, i32, i32
  }
  func.func @transform_2(%arg0: i32) -> (i32, i32) {
    %c0_i32 = arith.constant 0 : i32
    %c0_i32_0 = arith.constant 0 : i32
    %c0_i32_1 = arith.constant 0 : i32
    return %c0_i32, %c0_i32_0 : i32, i32
  }
  func.func @transform_3(%arg0: i32) -> (i32, i32) {
    %c0_i32 = arith.constant 0 : i32
    %c0_i32_0 = arith.constant 0 : i32
    %c0_i32_1 = arith.constant 0 : i32
    return %c0_i32, %c0_i32_0 : i32, i32
  }
  func.func @transform_4(%arg0: i32) -> (i32, i32) {
    %c0_i32 = arith.constant 0 : i32
    %c0_i32_0 = arith.constant 0 : i32
    %c0_i32_1 = arith.constant 0 : i32
    return %c0_i32, %c0_i32_0 : i32, i32
  }
  func.func @transform_5(%arg0: i32) -> (i32, i32) {
    %c0_i32 = arith.constant 0 : i32
    %c0_i32_0 = arith.constant 0 : i32
    %c0_i32_1 = arith.constant 0 : i32
    return %c0_i32, %c0_i32_0 : i32, i32
  }
  func.func @transform_6(%arg0: i32) -> (i32, i32) {
    %c0_i32 = arith.constant 0 : i32
    %c0_i32_0 = arith.constant 0 : i32
    %c0_i32_1 = arith.constant 0 : i32
    return %c0_i32, %c0_i32_0 : i32, i32
  }
  func.func @transform_7(%arg0: i32) -> (i32, i32) {
    %c0_i32 = arith.constant 0 : i32
    %c0_i32_0 = arith.constant 0 : i32
    %c0_i32_1 = arith.constant 0 : i32
    return %c0_i32, %c0_i32_0 : i32, i32
  }
  func.func @transform_8(%arg0: i32) -> (i32, i32) {
    %c0_i32 = arith.constant 0 : i32
    %c0_i32_0 = arith.constant 0 : i32
    %c0_i32_1 = arith.constant 0 : i32
    return %c0_i32, %c0_i32_0 : i32, i32
  }
  func.func @transform_9(%arg0: i32) -> (i32, i32) {
    %c0_i32 = arith.constant 0 : i32
    %c0_i32_0 = arith.constant 0 : i32
    %c0_i32_1 = arith.constant 0 : i32
    return %c0_i32, %c0_i32_0 : i32, i32
  }
  func.func @transform_10(%arg0: i32) -> (i32, i32) {
    %c0_i32 = arith.constant 0 : i32
    %c0_i32_0 = arith.constant 0 : i32
    %c0_i32_1 = arith.constant 0 : i32
    return %c0_i32, %c0_i32_0 : i32, i32
  }
  func.func @transform_11(%arg0: i32) -> (i32, i32) {
    %c0_i32 = arith.constant 0 : i32
    %c0_i32_0 = arith.constant 0 : i32
    %c0_i32_1 = arith.constant 0 : i32
    return %c0_i32, %c0_i32_0 : i32, i32
  }
  func.func @transform_12(%arg0: i32) -> (i32, i32) {
    %c0_i32 = arith.constant 0 : i32
    %c0_i32_0 = arith.constant 0 : i32
    %c0_i32_1 = arith.constant 0 : i32
    return %c0_i32, %c0_i32_0 : i32, i32
  }
  func.func @transform_13(%arg0: i32) -> (i32, i32) {
    %c0_i32 = arith.constant 0 : i32
    %c0_i32_0 = arith.constant 0 : i32
    %c0_i32_1 = arith.constant 0 : i32
    return %c0_i32, %c0_i32_0 : i32, i32
  }
  func.func @transform_14(%arg0: i32) -> (i32, i32) {
    %c0_i32 = arith.constant 0 : i32
    %c0_i32_0 = arith.constant 0 : i32
    %c0_i32_1 = arith.constant 0 : i32
    return %c0_i32, %c0_i32_0 : i32, i32
  }
  func.func @transform_15(%arg0: i32) -> (i32, i32) {
    %c0_i32 = arith.constant 0 : i32
    %c0_i32_0 = arith.constant 0 : i32
    %c0_i32_1 = arith.constant 0 : i32
    return %c0_i32, %c0_i32_0 : i32, i32
  }
  func.func @transform_16(%arg0: i32) -> (i32, i32) {
    %c0_i32 = arith.constant 0 : i32
    %c0_i32_0 = arith.constant 0 : i32
    %c0_i32_1 = arith.constant 0 : i32
    return %c0_i32, %c0_i32_0 : i32, i32
  }
  func.func @transform_17(%arg0: i32) -> (i32, i32) {
    %c0_i32 = arith.constant 0 : i32
    %c0_i32_0 = arith.constant 0 : i32
    %c0_i32_1 = arith.constant 0 : i32
    return %c0_i32, %c0_i32_0 : i32, i32
  }
  func.func @transform_18(%arg0: i32) -> (i32, i32, i32) {
    %c0_i32 = arith.constant 0 : i32
    %c0_i32_0 = arith.constant 0 : i32
    %c0_i32_1 = arith.constant 0 : i32
    return %arg0, %c0_i32, %c0_i32_0 : i32, i32, i32
  }
  func.func @transform_19(%arg0: i32) -> (i32, i32, i32) {
    %c0_i32 = arith.constant 0 : i32
    %c0_i32_0 = arith.constant 0 : i32
    %c0_i32_1 = arith.constant 0 : i32
    return %arg0, %c0_i32, %c0_i32_0 : i32, i32, i32
  }
}

</mosaic_0001>

<llo_original>
// kernel: module_block_forward.1
$region0: #{module_block_forward.1}
  #allocation0 [shape = 'u32[]', space=smem, size = 0x4, offset = 0x4, fixed_abs, tag = 'smem constant byte address 0x4 - core index']
  #allocation1 [shape = 'u32[72,128]{1,0:T(1,128)}', space=vmem, size = 0x9000, scoped, tag = 'internal scratch']
  %s0 = inlined_call_operand.vmem [shape: f32[2,8,32], index: 0, kind: input, shape index: {}]
  %s1 = inlined_call_operand.hbm [shape: f32[2,8,32], index: 1, kind: input, shape index: {}]
  %s2 = inlined_call_operand.hbm [shape: bf16[32,32], index: 2, kind: input, shape index: {}]
  %s3 = inlined_call_operand.hbm [shape: f32[1,32], index: 3, kind: input, shape index: {}]
  %s4 = inlined_call_operand.hbm [shape: bf16[32,64], index: 4, kind: input, shape index: {}]
  %s5 = inlined_call_operand.hbm [shape: bf16[32,32], index: 5, kind: input, shape index: {}]
  %s6 = inlined_call_operand.vmem [shape: f32[32,32], index: 6, kind: input, shape index: {}]
  %s7 = inlined_call_operand.hbm [shape: f32[8,32], index: 7, kind: input, shape index: {}]
  %s8 = inlined_call_operand.hbm [shape: f32[8,32], index: 8, kind: input, shape index: {}]
  %s9 = inlined_call_operand.hbm [shape: bf16[32,32], index: 9, kind: input, shape index: {}]
  %s10 = inlined_call_operand.hbm [shape: bf16[32,32], index: 10, kind: input, shape index: {}]
  %s11 = inlined_call_operand.hbm [shape: f32[1,32], index: 11, kind: input, shape index: {}]
  %s12 = inlined_call_operand.hbm [shape: bf16[32,32], index: 12, kind: input, shape index: {}]
  %s13 = inlined_call_operand.hbm [shape: f32[1,32], index: 13, kind: input, shape index: {}]
  %s14 = inlined_call_operand.hbm [shape: f32[1,32], index: 14, kind: input, shape index: {}]
  %s15 = inlined_call_operand.hbm [shape: bf16[32,64], index: 15, kind: input, shape index: {}]
  %s16 = inlined_call_operand.vmem [shape: bf16[32,64], index: 16, kind: input, shape index: {}]
  %s17 = inlined_call_operand.vmem [shape: bf16[64,32], index: 17, kind: input, shape index: {}]
  %s18 = inlined_call_operand.hbm [shape: f32[2,8,32], index: 18, kind: output, shape index: {0}]
  %s19 = inlined_call_operand.hbm [shape: f32[2,8,32], index: 19, kind: output, shape index: {1}]
  %20 = xla_tuple %s18, %s19
  %s21 = sld [smem:[#allocation0]]
  $region169: #{module_block_forward.1} parent=0
    _
  %s23 = ssub.s32 1, %s21
  %s24 = scalar_select 0, %s23, %s21
  $region1: #{module_block_forward.1} parent=0
    #allocation2 [shape = 'u8[8192]{0}', space=vmem, size = 0x2000, scoped, tag = 'input window, operand 1']
    #allocation3 [shape = 's32[2]{0}', space=sflag, size = 0x8, scoped, tag = 'scoped memory for module_block_forward.1']
    #allocation4 [shape = 's32[2]{0}', space=sflag, size = 0x8, scoped, tag = 'scoped memory for module_block_forward.1']
    #allocation5 [shape = 'u8[8192]{0}', space=vmem, size = 0x2000, scoped, tag = 'input window, operand 2, single buffered']
    #allocation6 [shape = 's32[1]{0}', space=sflag, size = 0x4, scoped, tag = 'scoped memory for module_block_forward.1']
    #allocation7 [shape = 'u8[512]{0}', space=vmem, size = 0x400, scoped, tag = 'input window, operand 3, single buffered']
    #allocation8 [shape = 'u8[8192]{0}', space=vmem, size = 0x2000, scoped, tag = 'input window, operand 4, single buffered']
    #allocation9 [shape = 's32[1]{0}', space=sflag, size = 0x4, scoped, tag = 'scoped memory for module_block_forward.1']
    #allocation10 [shape = 'u8[8192]{0}', space=vmem, size = 0x2000, scoped, tag = 'input window, operand 5, single buffered']
    #allocation11 [shape = 'u8[4096]{0}', space=vmem, size = 0x1000, scoped, tag = 'input window, operand 7, single buffered']
    #allocation12 [shape = 's32[1]{0}', space=sflag, size = 0x4, scoped, tag = 'scoped memory for module_block_forward.1']
    #allocation13 [shape = 'u8[4096]{0}', space=vmem, size = 0x1000, scoped, tag = 'input window, operand 8, single buffered']
    #allocation14 [shape = 'u8[8192]{0}', space=vmem, size = 0x2000, scoped, tag = 'input window, operand 9, single buffered']
    #allocation15 [shape = 's32[1]{0}', space=sflag, size = 0x4, scoped, tag = 'scoped memory for module_block_forward.1']
    #allocation16 [shape = 'u8[8192]{0}', space=vmem, size = 0x2000, scoped, tag = 'input window, operand 10, single buffered']
    #allocation17 [shape = 'u8[512]{0}', space=vmem, size = 0x400, scoped, tag = 'input window, operand 11, single buffered']
    #allocation18 [shape = 's32[1]{0}', space=sflag, size = 0x4, scoped, tag = 'scoped memory for module_block_forward.1']
    #allocation19 [shape = 'u8[8192]{0}', space=vmem, size = 0x2000, scoped, tag = 'input window, operand 12, single buffered']
    #allocation20 [shape = 'u8[512]{0}', space=vmem, size = 0x400, scoped, tag = 'input window, operand 13, single buffered']
    #allocation21 [shape = 's32[1]{0}', space=sflag, size = 0x4, scoped, tag = 'scoped memory for module_block_forward.1']
    #allocation22 [shape = 'u8[512]{0}', space=vmem, size = 0x400, scoped, tag = 'input window, operand 14, single buffered']
    #allocation23 [shape = 'u8[8192]{0}', space=vmem, size = 0x2000, scoped, tag = 'input window, operand 15, single buffered']
    #allocation24 [shape = 's32[1]{0}', space=sflag, size = 0x4, scoped, tag = 'scoped memory for module_block_forward.1']
    #allocation25 [shape = 'u8[8192]{0}', space=vmem, size = 0x2000, scoped, tag = 'output window, operand 0']
    #allocation26 [shape = 'u8[8192]{0}', space=vmem, size = 0x2000, scoped, tag = 'output window, operand 1']
    #allocation27 [shape = 's32[2]{0}', space=sflag, size = 0x8, scoped, tag = 'scoped memory for module_block_forward.1']
    %25 = vsyncpa [#allocation3], 0
    %s26 = scalar_lea.sflag [#allocation3], 1
    %27 = vsyncpa %s26, 0
    %28 = vsyncpa [#allocation6], 0
    %29 = vsyncpa [#allocation9], 0
    %30 = vsyncpa [#allocation12], 0
    %31 = vsyncpa [#allocation15], 0
    %32 = vsyncpa [#allocation18], 0
    %33 = vsyncpa [#allocation21], 0
    %34 = vsyncpa [#allocation24], 0
    %35 = vsyncpa [#allocation4], 0
    %s36 = scalar_lea.sflag [#allocation4], 1
    %37 = vsyncpa %s36, 0
    %38 = vsyncpa [#allocation27], 0
    %s39 = scalar_lea.sflag [#allocation27], 1
    %40 = vsyncpa %s39, 0
    loop: start=0, step=1, limit=4
    $region2: #{module_block_forward.1} parent=1 // loop_pre_header
      _
    $region3: #{module_block_forward.1} parent=1 // loop_header
      %s42 = sphi 0, %s46
      %p43 = scmp.ge.s32.totalorder %s42, 4
      %s52 = sphi 0, %s54
      %s55 = sphi 0, %s52
      %s56 = sphi 0, %s55
      %s72 = sphi 0, %s56
      %s78 = sphi 0, %s80
      %s81 = sphi 0, %s78
      %s82 = sphi 0, %s81
      %s98 = sphi 0, %s82
      %s102 = sphi 0, %s102
      %s104 = sphi 0, %s102
      %s105 = sphi 0, %s104
      %s119 = sphi 0, %s105
      %s123 = sphi 0, %s123
      %s125 = sphi 0, %s123
      %s126 = sphi 0, %s125
      %s140 = sphi 0, %s126
      %s144 = sphi 0, %s144
      %s146 = sphi 0, %s144
      %s147 = sphi 0, %s146
      %s161 = sphi 0, %s147
      %s165 = sphi 0, %s165
      %s167 = sphi 0, %s165
      %s168 = sphi 0, %s167
      %s182 = sphi 0, %s168
      %s186 = sphi 0, %s186
      %s188 = sphi 0, %s186
      %s189 = sphi 0, %s188
      %s203 = sphi 0, %s189
      %s207 = sphi 0, %s207
      %s209 = sphi 0, %s207
      %s210 = sphi 0, %s209
      %s224 = sphi 0, %s210
      %s228 = sphi 0, %s228
      %s230 = sphi 0, %s228
      %s231 = sphi 0, %s230
      %s245 = sphi 0, %s231
      %s249 = sphi 0, %s249
      %s251 = sphi 0, %s249
      %s252 = sphi 0, %s251
      %s266 = sphi 0, %s252
      %s270 = sphi 0, %s270
      %s272 = sphi 0, %s270
      %s273 = sphi 0, %s272
      %s287 = sphi 0, %s273
      %s291 = sphi 0, %s291
      %s293 = sphi 0, %s291
      %s294 = sphi 0, %s293
      %s308 = sphi 0, %s294
      %s312 = sphi 0, %s312
      %s314 = sphi 0, %s312
      %s315 = sphi 0, %s314
      %s329 = sphi 0, %s315
      %s333 = sphi 0, %s333
      %s335 = sphi 0, %s333
      %s336 = sphi 0, %s335
      %s350 = sphi 0, %s336
      %s354 = sphi 0, %s354
      %s356 = sphi 0, %s354
      %s357 = sphi 0, %s356
      %s371 = sphi 0, %s357
      %s375 = sphi 0, %s375
      %s377 = sphi 0, %s375
      %s378 = sphi 0, %s377
      %s392 = sphi 0, %s378
      %s396 = sphi 0, %s396
      %s398 = sphi 0, %s396
      %s399 = sphi 0, %s398
      %s413 = sphi 0, %s399
      %s417 = sphi 0, %s417
      %s419 = sphi 0, %s417
      %s420 = sphi 0, %s419
      %s434 = sphi 0, %s420
      %s440 = sphi 0, %s442
      %s443 = sphi 0, %s440
      %s444 = sphi 0, %s443
      %s460 = sphi 0, %s444
      %s466 = sphi 0, %s468
      %s469 = sphi 0, %s466
      %s470 = sphi 0, %s469
      %s486 = sphi 0, %s470
    $region4: #{module_block_forward.1} parent=1 // loop_header_branch
      %45 = sbr.rel (%p43) target = $region8
    $region5: #{module_block_forward.1} parent=1 // loop_body
      %s47 = ssub.s32 %s42, 1
      %s48 = ssub.s32 %s42, 2
      %s49 = sadd.s32 %s42, 1
      %s50 = ssub.s32 %s42, %s49
      %p51 = scmp.eq.s32.totalorder %s50, 0
      %s53 = sadd.s32 %s52, 1
      %s54 = scalar_select %p51, %s52, %s53
      %p57 = pneg %p51
      %p58 = scmp.eq.s32.totalorder %s42, 1
      %p59 = por %p57, %p58
      %p60 = scmp.ne.s32.totalorder %s52, %s55
      %p61 = scmp.eq.s32.totalorder %s42, 0
      %p62 = por %p60, %p61
      %p63 = scmp.ne.s32.totalorder %s52, %s55
      %p64 = scmp.eq.s32.totalorder %s47, 1
      %p65 = por %p63, %p64
      %p66 = scmp.ne.s32.totalorder %s55, %s56
      %p67 = scmp.eq.s32.totalorder %s47, 0
      %p68 = por %p66, %p67
      %p69 = scmp.ne.s32.totalorder %s55, %s56
      %p70 = scmp.eq.s32.totalorder %s48, 1
      %p71 = por %p69, %p70
      %p73 = scmp.ne.s32.totalorder %s56, %s72
      %p74 = scmp.eq.s32.totalorder %s48, 0
      %p75 = por %p73, %p74
      %s76 = ssub.s32 %s42, %s49
      %p77 = scmp.eq.s32.totalorder %s76, 0
      %s79 = sadd.s32 %s78, 1
      %s80 = scalar_select %p77, %s78, %s79
      %p83 = pneg %p77
      %p84 = scmp.eq.s32.totalorder %s42, 1
      %p85 = por %p83, %p84
      %p86 = scmp.ne.s32.totalorder %s78, %s81
      %p87 = scmp.eq.s32.totalorder %s42, 0
      %p88 = por %p86, %p87
      %p89 = scmp.ne.s32.totalorder %s78, %s81
      %p90 = scmp.eq.s32.totalorder %s47, 1
      %p91 = por %p89, %p90
      %p92 = scmp.ne.s32.totalorder %s81, %s82
      %p93 = scmp.eq.s32.totalorder %s47, 0
      %p94 = por %p92, %p93
      %p95 = scmp.ne.s32.totalorder %s81, %s82
      %p96 = scmp.eq.s32.totalorder %s48, 1
      %p97 = por %p95, %p96
      %p99 = scmp.ne.s32.totalorder %s82, %s98
      %p100 = scmp.eq.s32.totalorder %s48, 0
      %p101 = por %p99, %p100
      %s103 = sadd.s32 %s102, 1
      %p106 = scmp.eq.s32.totalorder %s42, 1
      %p107 = scmp.ne.s32.totalorder %s102, %s104
      %p108 = scmp.eq.s32.totalorder %s42, 0
      %p109 = por %p107, %p108
      %p110 = scmp.ne.s32.totalorder %s102, %s104
      %p111 = scmp.eq.s32.totalorder %s47, 1
      %p112 = por %p110, %p111
      %p113 = scmp.ne.s32.totalorder %s104, %s105
      %p114 = scmp.eq.s32.totalorder %s47, 0
      %p115 = por %p113, %p114
      %p116 = scmp.ne.s32.totalorder %s104, %s105
      %p117 = scmp.eq.s32.totalorder %s48, 1
      %p118 = por %p116, %p117
      %p120 = scmp.ne.s32.totalorder %s105, %s119
      %p121 = scmp.eq.s32.totalorder %s48, 0
      %p122 = por %p120, %p121
      %s124 = sadd.s32 %s123, 1
      %p127 = scmp.eq.s32.totalorder %s42, 1
      %p128 = scmp.ne.s32.totalorder %s123, %s125
      %p129 = scmp.eq.s32.totalorder %s42, 0
      %p130 = por %p128, %p129
      %p131 = scmp.ne.s32.totalorder %s123, %s125
      %p132 = scmp.eq.s32.totalorder %s47, 1
      %p133 = por %p131, %p132
      %p134 = scmp.ne.s32.totalorder %s125, %s126
      %p135 = scmp.eq.s32.totalorder %s47, 0
      %p136 = por %p134, %p135
      %p137 = scmp.ne.s32.totalorder %s125, %s126
      %p138 = scmp.eq.s32.totalorder %s48, 1
      %p139 = por %p137, %p138
      %p141 = scmp.ne.s32.totalorder %s126, %s140
      %p142 = scmp.eq.s32.totalorder %s48, 0
      %p143 = por %p141, %p142
      %s145 = sadd.s32 %s144, 1
      %p148 = scmp.eq.s32.totalorder %s42, 1
      %p149 = scmp.ne.s32.totalorder %s144, %s146
      %p150 = scmp.eq.s32.totalorder %s42, 0
      %p151 = por %p149, %p150
      %p152 = scmp.ne.s32.totalorder %s144, %s146
      %p153 = scmp.eq.s32.totalorder %s47, 1
      %p154 = por %p152, %p153
      %p155 = scmp.ne.s32.totalorder %s146, %s147
      %p156 = scmp.eq.s32.totalorder %s47, 0
      %p157 = por %p155, %p156
      %p158 = scmp.ne.s32.totalorder %s146, %s147
      %p159 = scmp.eq.s32.totalorder %s48, 1
      %p160 = por %p158, %p159
      %p162 = scmp.ne.s32.totalorder %s147, %s161
      %p163 = scmp.eq.s32.totalorder %s48, 0
      %p164 = por %p162, %p163
      %s166 = sadd.s32 %s165, 1
      %p169 = scmp.eq.s32.totalorder %s42, 1
      %p170 = scmp.ne.s32.totalorder %s165, %s167
      %p171 = scmp.eq.s32.totalorder %s42, 0
      %p172 = por %p170, %p171
      %p173 = scmp.ne.s32.totalorder %s165, %s167
      %p174 = scmp.eq.s32.totalorder %s47, 1
      %p175 = por %p173, %p174
      %p176 = scmp.ne.s32.totalorder %s167, %s168
      %p177 = scmp.eq.s32.totalorder %s47, 0
      %p178 = por %p176, %p177
      %p179 = scmp.ne.s32.totalorder %s167, %s168
      %p180 = scmp.eq.s32.totalorder %s48, 1
      %p181 = por %p179, %p180
      %p183 = scmp.ne.s32.totalorder %s168, %s182
      %p184 = scmp.eq.s32.totalorder %s48, 0
      %p185 = por %p183, %p184
      %s187 = sadd.s32 %s186, 1
      %p190 = scmp.eq.s32.totalorder %s42, 1
      %p191 = scmp.ne.s32.totalorder %s186, %s188
      %p192 = scmp.eq.s32.totalorder %s42, 0
      %p193 = por %p191, %p192
      %p194 = scmp.ne.s32.totalorder %s186, %s188
      %p195 = scmp.eq.s32.totalorder %s47, 1
      %p196 = por %p194, %p195
      %p197 = scmp.ne.s32.totalorder %s188, %s189
      %p198 = scmp.eq.s32.totalorder %s47, 0
      %p199 = por %p197, %p198
      %p200 = scmp.ne.s32.totalorder %s188, %s189
      %p201 = scmp.eq.s32.totalorder %s48, 1
      %p202 = por %p200, %p201
      %p204 = scmp.ne.s32.totalorder %s189, %s203
      %p205 = scmp.eq.s32.totalorder %s48, 0
      %p206 = por %p204, %p205
      %s208 = sadd.s32 %s207, 1
      %p211 = scmp.eq.s32.totalorder %s42, 1
      %p212 = scmp.ne.s32.totalorder %s207, %s209
      %p213 = scmp.eq.s32.totalorder %s42, 0
      %p214 = por %p212, %p213
      %p215 = scmp.ne.s32.totalorder %s207, %s209
      %p216 = scmp.eq.s32.totalorder %s47, 1
      %p217 = por %p215, %p216
      %p218 = scmp.ne.s32.totalorder %s209, %s210
      %p219 = scmp.eq.s32.totalorder %s47, 0
      %p220 = por %p218, %p219
      %p221 = scmp.ne.s32.totalorder %s209, %s210
      %p222 = scmp.eq.s32.totalorder %s48, 1
      %p223 = por %p221, %p222
      %p225 = scmp.ne.s32.totalorder %s210, %s224
      %p226 = scmp.eq.s32.totalorder %s48, 0
      %p227 = por %p225, %p226
      %s229 = sadd.s32 %s228, 1
      %p232 = scmp.eq.s32.totalorder %s42, 1
      %p233 = scmp.ne.s32.totalorder %s228, %s230
      %p234 = scmp.eq.s32.totalorder %s42, 0
      %p235 = por %p233, %p234
      %p236 = scmp.ne.s32.totalorder %s228, %s230
      %p237 = scmp.eq.s32.totalorder %s47, 1
      %p238 = por %p236, %p237
      %p239 = scmp.ne.s32.totalorder %s230, %s231
      %p240 = scmp.eq.s32.totalorder %s47, 0
      %p241 = por %p239, %p240
      %p242 = scmp.ne.s32.totalorder %s230, %s231
      %p243 = scmp.eq.s32.totalorder %s48, 1
      %p244 = por %p242, %p243
      %p246 = scmp.ne.s32.totalorder %s231, %s245
      %p247 = scmp.eq.s32.totalorder %s48, 0
      %p248 = por %p246, %p247
      %s250 = sadd.s32 %s249, 1
      %p253 = scmp.eq.s32.totalorder %s42, 1
      %p254 = scmp.ne.s32.totalorder %s249, %s251
      %p255 = scmp.eq.s32.totalorder %s42, 0
      %p256 = por %p254, %p255
      %p257 = scmp.ne.s32.totalorder %s249, %s251
      %p258 = scmp.eq.s32.totalorder %s47, 1
      %p259 = por %p257, %p258
      %p260 = scmp.ne.s32.totalorder %s251, %s252
      %p261 = scmp.eq.s32.totalorder %s47, 0
      %p262 = por %p260, %p261
      %p263 = scmp.ne.s32.totalorder %s251, %s252
      %p264 = scmp.eq.s32.totalorder %s48, 1
      %p265 = por %p263, %p264
      %p267 = scmp.ne.s32.totalorder %s252, %s266
      %p268 = scmp.eq.s32.totalorder %s48, 0
      %p269 = por %p267, %p268
      %s271 = sadd.s32 %s270, 1
      %p274 = scmp.eq.s32.totalorder %s42, 1
      %p275 = scmp.ne.s32.totalorder %s270, %s272
      %p276 = scmp.eq.s32.totalorder %s42, 0
      %p277 = por %p275, %p276
      %p278 = scmp.ne.s32.totalorder %s270, %s272
      %p279 = scmp.eq.s32.totalorder %s47, 1
      %p280 = por %p278, %p279
      %p281 = scmp.ne.s32.totalorder %s272, %s273
      %p282 = scmp.eq.s32.totalorder %s47, 0
      %p283 = por %p281, %p282
      %p284 = scmp.ne.s32.totalorder %s272, %s273
      %p285 = scmp.eq.s32.totalorder %s48, 1
      %p286 = por %p284, %p285
      %p288 = scmp.ne.s32.totalorder %s273, %s287
      %p289 = scmp.eq.s32.totalorder %s48, 0
      %p290 = por %p288, %p289
      %s292 = sadd.s32 %s291, 1
      %p295 = scmp.eq.s32.totalorder %s42, 1
      %p296 = scmp.ne.s32.totalorder %s291, %s293
      %p297 = scmp.eq.s32.totalorder %s42, 0
      %p298 = por %p296, %p297
      %p299 = scmp.ne.s32.totalorder %s291, %s293
      %p300 = scmp.eq.s32.totalorder %s47, 1
      %p301 = por %p299, %p300
      %p302 = scmp.ne.s32.totalorder %s293, %s294
      %p303 = scmp.eq.s32.totalorder %s47, 0
      %p304 = por %p302, %p303
      %p305 = scmp.ne.s32.totalorder %s293, %s294
      %p306 = scmp.eq.s32.totalorder %s48, 1
      %p307 = por %p305, %p306
      %p309 = scmp.ne.s32.totalorder %s294, %s308
      %p310 = scmp.eq.s32.totalorder %s48, 0
      %p311 = por %p309, %p310
      %s313 = sadd.s32 %s312, 1
      %p316 = scmp.eq.s32.totalorder %s42, 1
      %p317 = scmp.ne.s32.totalorder %s312, %s314
      %p318 = scmp.eq.s32.totalorder %s42, 0
      %p319 = por %p317, %p318
      %p320 = scmp.ne.s32.totalorder %s312, %s314
      %p321 = scmp.eq.s32.totalorder %s47, 1
      %p322 = por %p320, %p321
      %p323 = scmp.ne.s32.totalorder %s314, %s315
      %p324 = scmp.eq.s32.totalorder %s47, 0
      %p325 = por %p323, %p324
      %p326 = scmp.ne.s32.totalorder %s314, %s315
      %p327 = scmp.eq.s32.totalorder %s48, 1
      %p328 = por %p326, %p327
      %p330 = scmp.ne.s32.totalorder %s315, %s329
      %p331 = scmp.eq.s32.totalorder %s48, 0
      %p332 = por %p330, %p331
      %s334 = sadd.s32 %s333, 1
      %p337 = scmp.eq.s32.totalorder %s42, 1
      %p338 = scmp.ne.s32.totalorder %s333, %s335
      %p339 = scmp.eq.s32.totalorder %s42, 0
      %p340 = por %p338, %p339
      %p341 = scmp.ne.s32.totalorder %s333, %s335
      %p342 = scmp.eq.s32.totalorder %s47, 1
      %p343 = por %p341, %p342
      %p344 = scmp.ne.s32.totalorder %s335, %s336
      %p345 = scmp.eq.s32.totalorder %s47, 0
      %p346 = por %p344, %p345
      %p347 = scmp.ne.s32.totalorder %s335, %s336
      %p348 = scmp.eq.s32.totalorder %s48, 1
      %p349 = por %p347, %p348
      %p351 = scmp.ne.s32.totalorder %s336, %s350
      %p352 = scmp.eq.s32.totalorder %s48, 0
      %p353 = por %p351, %p352
      %s355 = sadd.s32 %s354, 1
      %p358 = scmp.eq.s32.totalorder %s42, 1
      %p359 = scmp.ne.s32.totalorder %s354, %s356
      %p360 = scmp.eq.s32.totalorder %s42, 0
      %p361 = por %p359, %p360
      %p362 = scmp.ne.s32.totalorder %s354, %s356
      %p363 = scmp.eq.s32.totalorder %s47, 1
      %p364 = por %p362, %p363
      %p365 = scmp.ne.s32.totalorder %s356, %s357
      %p366 = scmp.eq.s32.totalorder %s47, 0
      %p367 = por %p365, %p366
      %p368 = scmp.ne.s32.totalorder %s356, %s357
      %p369 = scmp.eq.s32.totalorder %s48, 1
      %p370 = por %p368, %p369
      %p372 = scmp.ne.s32.totalorder %s357, %s371
      %p373 = scmp.eq.s32.totalorder %s48, 0
      %p374 = por %p372, %p373
      %s376 = sadd.s32 %s375, 1
      %p379 = scmp.eq.s32.totalorder %s42, 1
      %p380 = scmp.ne.s32.totalorder %s375, %s377
      %p381 = scmp.eq.s32.totalorder %s42, 0
      %p382 = por %p380, %p381
      %p383 = scmp.ne.s32.totalorder %s375, %s377
      %p384 = scmp.eq.s32.totalorder %s47, 1
      %p385 = por %p383, %p384
      %p386 = scmp.ne.s32.totalorder %s377, %s378
      %p387 = scmp.eq.s32.totalorder %s47, 0
      %p388 = por %p386, %p387
      %p389 = scmp.ne.s32.totalorder %s377, %s378
      %p390 = scmp.eq.s32.totalorder %s48, 1
      %p391 = por %p389, %p390
      %p393 = scmp.ne.s32.totalorder %s378, %s392
      %p394 = scmp.eq.s32.totalorder %s48, 0
      %p395 = por %p393, %p394
      %s397 = sadd.s32 %s396, 1
      %p400 = scmp.eq.s32.totalorder %s42, 1
      %p401 = scmp.ne.s32.totalorder %s396, %s398
      %p402 = scmp.eq.s32.totalorder %s42, 0
      %p403 = por %p401, %p402
      %p404 = scmp.ne.s32.totalorder %s396, %s398
      %p405 = scmp.eq.s32.totalorder %s47, 1
      %p406 = por %p404, %p405
      %p407 = scmp.ne.s32.totalorder %s398, %s399
      %p408 = scmp.eq.s32.totalorder %s47, 0
      %p409 = por %p407, %p408
      %p410 = scmp.ne.s32.totalorder %s398, %s399
      %p411 = scmp.eq.s32.totalorder %s48, 1
      %p412 = por %p410, %p411
      %p414 = scmp.ne.s32.totalorder %s399, %s413
      %p415 = scmp.eq.s32.totalorder %s48, 0
      %p416 = por %p414, %p415
      %s418 = sadd.s32 %s417, 1
      %p421 = scmp.eq.s32.totalorder %s42, 1
      %p422 = scmp.ne.s32.totalorder %s417, %s419
      %p423 = scmp.eq.s32.totalorder %s42, 0
      %p424 = por %p422, %p423
      %p425 = scmp.ne.s32.totalorder %s417, %s419
      %p426 = scmp.eq.s32.totalorder %s47, 1
      %p427 = por %p425, %p426
      %p428 = scmp.ne.s32.totalorder %s419, %s420
      %p429 = scmp.eq.s32.totalorder %s47, 0
      %p430 = por %p428, %p429
      %p431 = scmp.ne.s32.totalorder %s419, %s420
      %p432 = scmp.eq.s32.totalorder %s48, 1
      %p433 = por %p431, %p432
      %p435 = scmp.ne.s32.totalorder %s420, %s434
      %p436 = scmp.eq.s32.totalorder %s48, 0
      %p437 = por %p435, %p436
      %s438 = ssub.s32 %s42, %s49
      %p439 = scmp.eq.s32.totalorder %s438, 0
      %s441 = sadd.s32 %s440, 1
      %s442 = scalar_select %p439, %s440, %s441
      %p445 = pneg %p439
      %p446 = scmp.eq.s32.totalorder %s42, 1
      %p447 = por %p445, %p446
      %p448 = scmp.ne.s32.totalorder %s440, %s443
      %p449 = scmp.eq.s32.totalorder %s42, 0
      %p450 = por %p448, %p449
      %p451 = scmp.ne.s32.totalorder %s440, %s443
      %p452 = scmp.eq.s32.totalorder %s47, 1
      %p453 = por %p451, %p452
      %p454 = scmp.ne.s32.totalorder %s443, %s444
      %p455 = scmp.eq.s32.totalorder %s47, 0
      %p456 = por %p454, %p455
      %p457 = scmp.ne.s32.totalorder %s443, %s444
      %p458 = scmp.eq.s32.totalorder %s48, 1
      %p459 = por %p457, %p458
      %p461 = scmp.ne.s32.totalorder %s444, %s460
      %p462 = scmp.eq.s32.totalorder %s48, 0
      %p463 = por %p461, %p462
      %s464 = ssub.s32 %s42, %s49
      %p465 = scmp.eq.s32.totalorder %s464, 0
      %s467 = sadd.s32 %s466, 1
      %s468 = scalar_select %p465, %s466, %s467
      %p471 = pneg %p465
      %p472 = scmp.eq.s32.totalorder %s42, 1
      %p473 = por %p471, %p472
      %p474 = scmp.ne.s32.totalorder %s466, %s469
      %p475 = scmp.eq.s32.totalorder %s42, 0
      %p476 = por %p474, %p475
      %p477 = scmp.ne.s32.totalorder %s466, %s469
      %p478 = scmp.eq.s32.totalorder %s47, 1
      %p479 = por %p477, %p478
      %p480 = scmp.ne.s32.totalorder %s469, %s470
      %p481 = scmp.eq.s32.totalorder %s47, 0
      %p482 = por %p480, %p481
      %p483 = scmp.ne.s32.totalorder %s469, %s470
      %p484 = scmp.eq.s32.totalorder %s48, 1
      %p485 = por %p483, %p484
      %p487 = scmp.ne.s32.totalorder %s470, %s486
      %p488 = scmp.eq.s32.totalorder %s48, 0
      %p489 = por %p487, %p488
      %p490 = scmp.le.s32.totalorder 1, %s42
      %p491 = scmp.lt.s32.totalorder %s42, 3
      %p492 = pnand %p490, %p491
      %p493 = pneg %p492
      // Predicated region
      $region9: #{module_block_forward.1} parent=5 // pred_check
        _
      $region10: #{module_block_forward.1} parent=5 // pred_check_branch
        %495 = sbr.rel (%p492) target = $region12
      $region11: #{module_block_forward.1} parent=5 // pred_region
        %s496 = ssub.s32 %s42, 1
        // Predicated region
        $region13: #{module_block_forward.1} parent=11 // pred_check
          %p497 = pneg %p115
        $region14: #{module_block_forward.1} parent=11 // pred_check_branch
          %499 = sbr.rel (%p497) target = $region16
        $region15: #{module_block_forward.1} parent=11 // pred_region
          %501 = vsyncadd [#allocation6], 0
          %s502 = sshll.u32 %s2, 4
          %s503 = int_to_ptr.hbm [resolvable:$true] %s502
          %s504 = sshll.u32 [#allocation5], 4
          %s505 = int_to_ptr.vmem [resolvable:$true] %s504
          %510 = dma.hbm_to_vmem [thread:$0]  %s503, 256, %s505, [#allocation6], 64, 64, 4
        $region16: #{module_block_forward.1} parent=11 // pred_fallthru
          _
        // Predicated region
        $region17: #{module_block_forward.1} parent=11 // pred_check
          %p511 = pneg %p136
        $region18: #{module_block_forward.1} parent=11 // pred_check_branch
          %513 = sbr.rel (%p511) target = $region20
        $region19: #{module_block_forward.1} parent=11 // pred_region
          %515 = vsyncadd [#allocation6], 0
          %s517 = sshll.u32 %s3, 4
          %s518 = int_to_ptr.hbm [resolvable:$true] %s517
          %s519 = sshll.u32 [#allocation7], 4
          %s520 = int_to_ptr.vmem [resolvable:$true] %s519
          %522 = dma.hbm_to_vmem [thread:$0]  %s518, 16, %s520, [#allocation6]
        $region20: #{module_block_forward.1} parent=11 // pred_fallthru
          _
        // Predicated region
        $region21: #{module_block_forward.1} parent=11 // pred_check
          %p523 = pneg %p157
        $region22: #{module_block_forward.1} parent=11 // pred_check_branch
          %525 = sbr.rel (%p523) target = $region24
        $region23: #{module_block_forward.1} parent=11 // pred_region
          %527 = vsyncadd [#allocation9], 0
          %s528 = sshll.u32 %s4, 4
          %s529 = int_to_ptr.hbm [resolvable:$true] %s528
          %s530 = sshll.u32 [#allocation8], 4
          %s531 = int_to_ptr.vmem [resolvable:$true] %s530
          %536 = dma.hbm_to_vmem [thread:$0]  %s529, 256, %s531, [#allocation9], 64, 64, 4
        $region24: #{module_block_forward.1} parent=11 // pred_fallthru
          _
        // Predicated region
        $region25: #{module_block_forward.1} parent=11 // pred_check
          %p537 = pneg %p178
        $region26: #{module_block_forward.1} parent=11 // pred_check_branch
          %539 = sbr.rel (%p537) target = $region28
        $region27: #{module_block_forward.1} parent=11 // pred_region
          %541 = vsyncadd [#allocation9], 0
          %s542 = sshll.u32 %s5, 4
          %s543 = int_to_ptr.hbm [resolvable:$true] %s542
          %s544 = sshll.u32 [#allocation10], 4
          %s545 = int_to_ptr.vmem [resolvable:$true] %s544
          %550 = dma.hbm_to_vmem [thread:$0]  %s543, 256, %s545, [#allocation9], 64, 64, 4
        $region28: #{module_block_forward.1} parent=11 // pred_fallthru
          _
        // Predicated region
        $region29: #{module_block_forward.1} parent=11 // pred_check
          %p551 = pneg %p199
        $region30: #{module_block_forward.1} parent=11 // pred_check_branch
          %553 = sbr.rel (%p551) target = $region32
        $region31: #{module_block_forward.1} parent=11 // pred_region
          _
        $region32: #{module_block_forward.1} parent=11 // pred_fallthru
          _
        // Predicated region
        $region33: #{module_block_forward.1} parent=11 // pred_check
          %p554 = pneg %p220
        $region34: #{module_block_forward.1} parent=11 // pred_check_branch
          %556 = sbr.rel (%p554) target = $region36
        $region35: #{module_block_forward.1} parent=11 // pred_region
          %558 = vsyncadd [#allocation12], 0
          %s560 = sshll.u32 %s7, 4
          %s561 = int_to_ptr.hbm [resolvable:$true] %s560
          %s562 = sshll.u32 [#allocation11], 4
          %s563 = int_to_ptr.vmem [resolvable:$true] %s562
          %565 = dma.hbm_to_vmem [thread:$0]  %s561, 128, %s563, [#allocation12]
        $region36: #{module_block_forward.1} parent=11 // pred_fallthru
          _
        // Predicated region
        $region37: #{module_block_forward.1} parent=11 // pred_check
          %p566 = pneg %p241
        $region38: #{module_block_forward.1} parent=11 // pred_check_branch
          %568 = sbr.rel (%p566) target = $region40
        $region39: #{module_block_forward.1} parent=11 // pred_region
          %570 = vsyncadd [#allocation12], 0
          %s572 = sshll.u32 %s8, 4
          %s573 = int_to_ptr.hbm [resolvable:$true] %s572
          %s574 = sshll.u32 [#allocation13], 4
          %s575 = int_to_ptr.vmem [resolvable:$true] %s574
          %577 = dma.hbm_to_vmem [thread:$0]  %s573, 128, %s575, [#allocation12]
        $region40: #{module_block_forward.1} parent=11 // pred_fallthru
          _
        // Predicated region
        $region41: #{module_block_forward.1} parent=11 // pred_check
          %p578 = pneg %p262
        $region42: #{module_block_forward.1} parent=11 // pred_check_branch
          %580 = sbr.rel (%p578) target = $region44
        $region43: #{module_block_forward.1} parent=11 // pred_region
          %582 = vsyncadd [#allocation15], 0
          %s583 = sshll.u32 %s9, 4
          %s584 = int_to_ptr.hbm [resolvable:$true] %s583
          %s585 = sshll.u32 [#allocation14], 4
          %s586 = int_to_ptr.vmem [resolvable:$true] %s585
          %591 = dma.hbm_to_vmem [thread:$0]  %s584, 256, %s586, [#allocation15], 64, 64, 4
        $region44: #{module_block_forward.1} parent=11 // pred_fallthru
          _
        // Predicated region
        $region45: #{module_block_forward.1} parent=11 // pred_check
          %p592 = pneg %p283
        $region46: #{module_block_forward.1} parent=11 // pred_check_branch
          %594 = sbr.rel (%p592) target = $region48
        $region47: #{module_block_forward.1} parent=11 // pred_region
          %596 = vsyncadd [#allocation15], 0
          %s597 = sshll.u32 %s10, 4
          %s598 = int_to_ptr.hbm [resolvable:$true] %s597
          %s599 = sshll.u32 [#allocation16], 4
          %s600 = int_to_ptr.vmem [resolvable:$true] %s599
          %605 = dma.hbm_to_vmem [thread:$0]  %s598, 256, %s600, [#allocation15], 64, 64, 4
        $region48: #{module_block_forward.1} parent=11 // pred_fallthru
          _
        // Predicated region
        $region49: #{module_block_forward.1} parent=11 // pred_check
          %p606 = pneg %p304
        $region50: #{module_block_forward.1} parent=11 // pred_check_branch
          %608 = sbr.rel (%p606) target = $region52
        $region51: #{module_block_forward.1} parent=11 // pred_region
          %610 = vsyncadd [#allocation18], 0
          %s612 = sshll.u32 %s11, 4
          %s613 = int_to_ptr.hbm [resolvable:$true] %s612
          %s614 = sshll.u32 [#allocation17], 4
          %s615 = int_to_ptr.vmem [resolvable:$true] %s614
          %617 = dma.hbm_to_vmem [thread:$0]  %s613, 16, %s615, [#allocation18]
        $region52: #{module_block_forward.1} parent=11 // pred_fallthru
          _
        // Predicated region
        $region53: #{module_block_forward.1} parent=11 // pred_check
          %p618 = pneg %p325
        $region54: #{module_block_forward.1} parent=11 // pred_check_branch
          %620 = sbr.rel (%p618) target = $region56
        $region55: #{module_block_forward.1} parent=11 // pred_region
          %622 = vsyncadd [#allocation18], 0
          %s623 = sshll.u32 %s12, 4
          %s624 = int_to_ptr.hbm [resolvable:$true] %s623
          %s625 = sshll.u32 [#allocation19], 4
          %s626 = int_to_ptr.vmem [resolvable:$true] %s625
          %631 = dma.hbm_to_vmem [thread:$0]  %s624, 256, %s626, [#allocation18], 64, 64, 4
        $region56: #{module_block_forward.1} parent=11 // pred_fallthru
          _
        // Predicated region
        $region57: #{module_block_forward.1} parent=11 // pred_check
          %p632 = pneg %p346
        $region58: #{module_block_forward.1} parent=11 // pred_check_branch
          %634 = sbr.rel (%p632) target = $region60
        $region59: #{module_block_forward.1} parent=11 // pred_region
          %636 = vsyncadd [#allocation21], 0
          %s638 = sshll.u32 %s13, 4
          %s639 = int_to_ptr.hbm [resolvable:$true] %s638
          %s640 = sshll.u32 [#allocation20], 4
          %s641 = int_to_ptr.vmem [resolvable:$true] %s640
          %643 = dma.hbm_to_vmem [thread:$0]  %s639, 16, %s641, [#allocation21]
        $region60: #{module_block_forward.1} parent=11 // pred_fallthru
          _
        // Predicated region
        $region61: #{module_block_forward.1} parent=11 // pred_check
          %p644 = pneg %p367
        $region62: #{module_block_forward.1} parent=11 // pred_check_branch
          %646 = sbr.rel (%p644) target = $region64
        $region63: #{module_block_forward.1} parent=11 // pred_region
          %648 = vsyncadd [#allocation21], 0
          %s650 = sshll.u32 %s14, 4
          %s651 = int_to_ptr.hbm [resolvable:$true] %s650
          %s652 = sshll.u32 [#allocation22], 4
          %s653 = int_to_ptr.vmem [resolvable:$true] %s652
          %655 = dma.hbm_to_vmem [thread:$0]  %s651, 16, %s653, [#allocation21]
        $region64: #{module_block_forward.1} parent=11 // pred_fallthru
          _
        // Predicated region
        $region65: #{module_block_forward.1} parent=11 // pred_check
          %p656 = pneg %p388
        $region66: #{module_block_forward.1} parent=11 // pred_check_branch
          %658 = sbr.rel (%p656) target = $region68
        $region67: #{module_block_forward.1} parent=11 // pred_region
          %660 = vsyncadd [#allocation24], 0
          %s661 = sshll.u32 %s15, 4
          %s662 = int_to_ptr.hbm [resolvable:$true] %s661
          %s663 = sshll.u32 [#allocation23], 4
          %s664 = int_to_ptr.vmem [resolvable:$true] %s663
          %669 = dma.hbm_to_vmem [thread:$0]  %s662, 256, %s664, [#allocation24], 64, 64, 4
        $region68: #{module_block_forward.1} parent=11 // pred_fallthru
          _
        // Predicated region
        $region69: #{module_block_forward.1} parent=11 // pred_check
          %p670 = pneg %p409
        $region70: #{module_block_forward.1} parent=11 // pred_check_branch
          %672 = sbr.rel (%p670) target = $region72
        $region71: #{module_block_forward.1} parent=11 // pred_region
          _
        $region72: #{module_block_forward.1} parent=11 // pred_fallthru
          _
        // Predicated region
        $region73: #{module_block_forward.1} parent=11 // pred_check
          %p673 = pneg %p430
        $region74: #{module_block_forward.1} parent=11 // pred_check_branch
          %675 = sbr.rel (%p673) target = $region76
        $region75: #{module_block_forward.1} parent=11 // pred_region
          _
        $region76: #{module_block_forward.1} parent=11 // pred_fallthru
          _
      $region12: #{module_block_forward.1} parent=5 // pred_fallthru
        _
      %p676 = scmp.lt.s32.totalorder %s42, 2
      // Predicated region
      $region77: #{module_block_forward.1} parent=5 // pred_check
        %p677 = pneg %p676
      $region78: #{module_block_forward.1} parent=5 // pred_check_branch
        %679 = sbr.rel (%p677) target = $region80
      $region79: #{module_block_forward.1} parent=5 // pred_region
        // Predicated region
        $region81: #{module_block_forward.1} parent=79 // pred_check
          %p680 = pneg %p62
        $region82: #{module_block_forward.1} parent=79 // pred_check_branch
          %682 = sbr.rel (%p680) target = $region84
        $region83: #{module_block_forward.1} parent=79 // pred_region
          %p683 = scmp.lt.s32.totalorder %s42, 1
          %s684 = scalar_select %p683, %s42, 1
          %s685 = smul.addr %s684, 8
          %s686 = scalar_lea.vmem %s0, %s685
        $region84: #{module_block_forward.1} parent=79 // pred_fallthru
          _
        // Predicated region
        $region85: #{module_block_forward.1} parent=79 // pred_check
          %p687 = pneg %p88
        $region86: #{module_block_forward.1} parent=79 // pred_check_branch
          %689 = sbr.rel (%p687) target = $region88
        $region87: #{module_block_forward.1} parent=79 // pred_region
          %s690 = sand.u32 %s78, 1
          %s691 = scalar_lea.sflag [#allocation3], %s690
          %s692 = sand.u32 %s78, 1
          %s693 = smul.addr %s692, 8
          %s694 = scalar_lea.vmem [#allocation2], %s693
          %696 = vsyncadd %s691, 0
          %s697 = smul.addr %s42, 8
          %s698 = scalar_lea.hbm %s1, %s697
          %s700 = sshll.u32 %s698, 4
          %s701 = int_to_ptr.hbm [resolvable:$true] %s700
          %s702 = sshll.u32 %s694, 4
          %s703 = int_to_ptr.vmem [resolvable:$true] %s702
          %705 = dma.hbm_to_vmem [thread:$0]  %s701, 128, %s703, %s691
        $region88: #{module_block_forward.1} parent=79 // pred_fallthru
          _
      $region80: #{module_block_forward.1} parent=5 // pred_fallthru
        _
      %p706 = scmp.le.s32.totalorder 1, %s42
      %p707 = scmp.lt.s32.totalorder %s42, 3
      %p708 = pnand %p706, %p707
      %p709 = pneg %p708
      // Predicated region
      $region89: #{module_block_forward.1} parent=5 // pred_check
        _
      $region90: #{module_block_forward.1} parent=5 // pred_check_branch
        %711 = sbr.rel (%p708) target = $region92
      $region91: #{module_block_forward.1} parent=5 // pred_region
        %s712 = ssub.s32 %s42, 1
        %s713 = sand.u32 %s81, 1
        %s714 = scalar_lea.sflag [#allocation3], %s713
        %s715 = sand.u32 %s81, 1
        %s716 = smul.addr %s715, 8
        %s717 = scalar_lea.vmem [#allocation2], %s716
        // Predicated region
        $region93: #{module_block_forward.1} parent=91 // pred_check
          %p718 = pneg %p94
        $region94: #{module_block_forward.1} parent=91 // pred_check_branch
          %720 = sbr.rel (%p718) target = $region96
        $region95: #{module_block_forward.1} parent=91 // pred_region
          %722 = dma.done %s714, 128
        $region96: #{module_block_forward.1} parent=91 // pred_fallthru
          _
        // Predicated region
        $region97: #{module_block_forward.1} parent=91 // pred_check
          %p723 = pneg %p115
        $region98: #{module_block_forward.1} parent=91 // pred_check_branch
          %725 = sbr.rel (%p723) target = $region100
        $region99: #{module_block_forward.1} parent=91 // pred_region
          %727 = dma.done [#allocation6], 256
        $region100: #{module_block_forward.1} parent=91 // pred_fallthru
          _
        // Predicated region
        $region101: #{module_block_forward.1} parent=91 // pred_check
          %p728 = pneg %p136
        $region102: #{module_block_forward.1} parent=91 // pred_check_branch
          %730 = sbr.rel (%p728) target = $region104
        $region103: #{module_block_forward.1} parent=91 // pred_region
          %732 = dma.done [#allocation6], 16
        $region104: #{module_block_forward.1} parent=91 // pred_fallthru
          _
        // Predicated region
        $region105: #{module_block_forward.1} parent=91 // pred_check
          %p733 = pneg %p157
        $region106: #{module_block_forward.1} parent=91 // pred_check_branch
          %735 = sbr.rel (%p733) target = $region108
        $region107: #{module_block_forward.1} parent=91 // pred_region
          %737 = dma.done [#allocation9], 256
        $region108: #{module_block_forward.1} parent=91 // pred_fallthru
          _
        // Predicated region
        $region109: #{module_block_forward.1} parent=91 // pred_check
          %p738 = pneg %p178
        $region110: #{module_block_forward.1} parent=91 // pred_check_branch
          %740 = sbr.rel (%p738) target = $region112
        $region111: #{module_block_forward.1} parent=91 // pred_region
          %742 = dma.done [#allocation9], 256
        $region112: #{module_block_forward.1} parent=91 // pred_fallthru
          _
        // Predicated region
        $region113: #{module_block_forward.1} parent=91 // pred_check
          %p743 = pneg %p220
        $region114: #{module_block_forward.1} parent=91 // pred_check_branch
          %745 = sbr.rel (%p743) target = $region116
        $region115: #{module_block_forward.1} parent=91 // pred_region
          %747 = dma.done [#allocation12], 128
        $region116: #{module_block_forward.1} parent=91 // pred_fallthru
          _
        // Predicated region
        $region117: #{module_block_forward.1} parent=91 // pred_check
          %p748 = pneg %p241
        $region118: #{module_block_forward.1} parent=91 // pred_check_branch
          %750 = sbr.rel (%p748) target = $region120
        $region119: #{module_block_forward.1} parent=91 // pred_region
          %752 = dma.done [#allocation12], 128
        $region120: #{module_block_forward.1} parent=91 // pred_fallthru
          _
        // Predicated region
        $region121: #{module_block_forward.1} parent=91 // pred_check
          %p753 = pneg %p262
        $region122: #{module_block_forward.1} parent=91 // pred_check_branch
          %755 = sbr.rel (%p753) target = $region124
        $region123: #{module_block_forward.1} parent=91 // pred_region
          %757 = dma.done [#allocation15], 256
        $region124: #{module_block_forward.1} parent=91 // pred_fallthru
          _
        // Predicated region
        $region125: #{module_block_forward.1} parent=91 // pred_check
          %p758 = pneg %p283
        $region126: #{module_block_forward.1} parent=91 // pred_check_branch
          %760 = sbr.rel (%p758) target = $region128
        $region127: #{module_block_forward.1} parent=91 // pred_region
          %762 = dma.done [#allocation15], 256
        $region128: #{module_block_forward.1} parent=91 // pred_fallthru
          _
        // Predicated region
        $region129: #{module_block_forward.1} parent=91 // pred_check
          %p763 = pneg %p304
        $region130: #{module_block_forward.1} parent=91 // pred_check_branch
          %765 = sbr.rel (%p763) target = $region132
        $region131: #{module_block_forward.1} parent=91 // pred_region
          %767 = dma.done [#allocation18], 16
        $region132: #{module_block_forward.1} parent=91 // pred_fallthru
          _
        // Predicated region
        $region133: #{module_block_forward.1} parent=91 // pred_check
          %p768 = pneg %p325
        $region134: #{module_block_forward.1} parent=91 // pred_check_branch
          %770 = sbr.rel (%p768) target = $region136
        $region135: #{module_block_forward.1} parent=91 // pred_region
          %772 = dma.done [#allocation18], 256
        $region136: #{module_block_forward.1} parent=91 // pred_fallthru
          _
        // Predicated region
        $region137: #{module_block_forward.1} parent=91 // pred_check
          %p773 = pneg %p346
        $region138: #{module_block_forward.1} parent=91 // pred_check_branch
          %775 = sbr.rel (%p773) target = $region140
        $region139: #{module_block_forward.1} parent=91 // pred_region
          %777 = dma.done [#allocation21], 16
        $region140: #{module_block_forward.1} parent=91 // pred_fallthru
          _
        // Predicated region
        $region141: #{module_block_forward.1} parent=91 // pred_check
          %p778 = pneg %p367
        $region142: #{module_block_forward.1} parent=91 // pred_check_branch
          %780 = sbr.rel (%p778) target = $region144
        $region143: #{module_block_forward.1} parent=91 // pred_region
          %782 = dma.done [#allocation21], 16
        $region144: #{module_block_forward.1} parent=91 // pred_fallthru
          _
        // Predicated region
        $region145: #{module_block_forward.1} parent=91 // pred_check
          %p783 = pneg %p388
        $region146: #{module_block_forward.1} parent=91 // pred_check_branch
          %785 = sbr.rel (%p783) target = $region148
        $region147: #{module_block_forward.1} parent=91 // pred_region
          %787 = dma.done [#allocation24], 256
        $region148: #{module_block_forward.1} parent=91 // pred_fallthru
          _
        %p788 = scmp.lt.s32.totalorder %s47, 1
        %s789 = scalar_select %p788, %s47, 1
        %s790 = smul.addr %s789, 8
        %s791 = scalar_lea.vmem %s0, %s790
        %p792 = pneg %p68
        %p793 = pneg %p65
        %s794 = sand.u32 %s81, 1
        %s795 = scalar_lea.sflag [#allocation3], %s794
        %s796 = sand.u32 %s81, 1
        %s797 = smul.addr %s796, 8
        %s798 = scalar_lea.vmem [#allocation2], %s797
        %p799 = pneg %p94
        %p800 = pneg %p91
        %p801 = pneg %p115
        %p802 = pneg %p112
        %p803 = pneg %p136
        %p804 = pneg %p133
        %p805 = pneg %p157
        %p806 = pneg %p154
        %p807 = pneg %p178
        %p808 = pneg %p175
        %p809 = pneg %p199
        %p810 = pneg %p196
        %p811 = pneg %p220
        %p812 = pneg %p217
        %p813 = pneg %p241
        %p814 = pneg %p238
        %p815 = pneg %p262
        %p816 = pneg %p259
        %p817 = pneg %p283
        %p818 = pneg %p280
        %p819 = pneg %p304
        %p820 = pneg %p301
        %p821 = pneg %p325
        %p822 = pneg %p322
        %p823 = pneg %p346
        %p824 = pneg %p343
        %p825 = pneg %p367
        %p826 = pneg %p364
        %p827 = pneg %p388
        %p828 = pneg %p385
        %p829 = pneg %p409
        %p830 = pneg %p406
        %p831 = pneg %p430
        %p832 = pneg %p427
        %p833 = pneg %p456
        %p834 = pneg %p453
        %s835 = sand.u32 %s443, 1
        %s836 = scalar_lea.sflag [#allocation4], %s835
        %s837 = sand.u32 %s443, 1
        %s838 = smul.addr %s837, 8
        %s839 = scalar_lea.vmem [#allocation25], %s838
        %p840 = pneg %p482
        %p841 = pneg %p479
        %s842 = sand.u32 %s469, 1
        %s843 = scalar_lea.sflag [#allocation27], %s842
        %s844 = sand.u32 %s469, 1
        %s845 = smul.addr %s844, 8
        %s846 = scalar_lea.vmem [#allocation26], %s845
        %p847 = scmp.lt.s32.totalorder %s47, 1
        %s848 = scalar_select %p847, %s47, 1
        %s849 = smul.addr %s848, 8
        %s850 = scalar_lea.vmem %s0, %s849
        %v852 = vld [vmem:[%s850] sm:$0xff]
        %v853 = vld [vmem:[%s717] sm:$0xff]
        %v854 = vpack.c.bf16 %v852, %v852
        %v855 = vld [vmem:[#allocation5] sm:$0xf]
        %v856 = vld [vmem:[#allocation5 + $0x4] sm:$0xf]
        %v857 = vld [vmem:[#allocation5 + $0x8] sm:$0xf]
        %v858 = vld [vmem:[#allocation5 + $0xc] sm:$0xf]
        %v863 = vunpack.c.l.b16 %v855
        %v864 = vunpack.c.l.b16 %v856
        %v865 = vunpack.c.l.b16 %v857
        %v866 = vunpack.c.l.b16 %v858
        %v867 = vpack.c.b16 %v864, %v863
        %v868 = vpack.c.b16 %v866, %v865
        %vm871 = vcmask 261120
        %v873 = vsel %vm871, %v854, 0
        %875 = vmatpush.bf16.msra.mxu0 0
        %876 = vmatpush.bf16.msra.mxu0 0
        %877 = vmatpush.bf16.msra.mxu0 0
        %878 = vmatpush.bf16.msra.mxu0 0
        %879 = vmatpush.bf16.msra.mxu0 0
        %880 = vmatpush.bf16.msra.mxu0 0
        %881 = vmatpush.bf16.msra.mxu0 %v868
        %882 = vmatpush.bf16.msra.mxu0 %v867
        %883 = vmatmul.bf16.gmra.mxu0 %v873
        %v884 = vpop.f32.mrf.mxu0
        %v885 = vadd.f32 0.0, %v884
        %v886 = vpop.f32.mrf.mxu0
        %887 = vdwg.mxu0
        %888 = vst.msk [vmem:[%s846] sm:$0xff] %vm871, %v885
        %v889 = vmul.f32 %v852, %v852
        %v890 = vsel %vm871, %v889, 0.0
        %891 = vadd.xlane.f32.xlu0 %v890
        %v892 = vpop.xlane.xlu0 %891
        %v893 = vrcp.pop 32.0
        %v894 = vmul.f32 32.0, %v893
        %v895 = vsub.f32 1.0, %v894
        %v896 = vmul.f32 %v893, %v895
        %v897 = vadd.f32 %v893, %v896
        %vm898 = vweird.f32 %v893
        %v899 = vsel %vm898, %v893, %v897
        %v900 = vmul.f32 %v892, %v899
        %v901 = vadd.f32 %v900, 1e-05
        %v902 = vrsqrt.pop %v901
        %v903 = vmul.f32 %v902, %v901
        %v904 = vmul.f32 %v903, %v902
        %v905 = vmul.f32 0.5, %v904
        %v906 = vsub.f32 1.5, %v905
        %v907 = vmul.f32 %v902, %v906
        %vm908 = vweird.f32 %v901
        %vm909 = vweird.f32 %v902
        %vm910 = vmor %vm908, %vm909
        %v911 = vsel %vm910, %v902, %v907
        %v912 = vld [vmem:[#allocation7] sm:$0x1]
        %v913 = vmul.f32 %v852, %v911
        %v915 = vperm.slane %v912, 0
        %v917 = vmul.f32 %v913, %v915
        %v918 = vpack.c.bf16 %v917, %v917
        %v919 = vld [vmem:[#allocation8] sm:$0xf]
        %v920 = vld [vmem:[#allocation8 + $0x4] sm:$0xf]
        %v921 = vld [vmem:[#allocation8 + $0x8] sm:$0xf]
        %v922 = vld [vmem:[#allocation8 + $0xc] sm:$0xf]
        %v927 = vunpack.c.l.b16 %v919
        %v928 = vunpack.c.l.b16 %v920
        %v929 = vunpack.c.l.b16 %v921
        %v930 = vunpack.c.l.b16 %v922
        %v931 = vpack.c.b16 %v928, %v927
        %v932 = vpack.c.b16 %v930, %v929
        %v936 = vsel %vm871, %v918, 0
        %938 = vmatpush.bf16.msra.mxu0 0
        %939 = vmatpush.bf16.msra.mxu0 0
        %940 = vmatpush.bf16.msra.mxu0 0
        %941 = vmatpush.bf16.msra.mxu0 0
        %942 = vmatpush.bf16.msra.mxu0 0
        %943 = vmatpush.bf16.msra.mxu0 0
        %944 = vmatpush.bf16.msra.mxu0 %v932
        %945 = vmatpush.bf16.msra.mxu0 %v931
        %946 = vmatmul.bf16.gmra.mxu0 %v936
        %v947 = vpop.f32.mrf.mxu0
        %v948 = vadd.f32 0.0, %v947
        %v949 = vpop.f32.mrf.mxu0
        %950 = vdwg.mxu0
        %v951 = vpack.c.bf16 %v853, %v853
        %v952 = vld [vmem:[#allocation10] sm:$0xf]
        %v953 = vld [vmem:[#allocation10 + $0x4] sm:$0xf]
        %v954 = vld [vmem:[#allocation10 + $0x8] sm:$0xf]
        %v955 = vld [vmem:[#allocation10 + $0xc] sm:$0xf]
        %v960 = vunpack.c.l.b16 %v952
        %v961 = vunpack.c.l.b16 %v953
        %v962 = vunpack.c.l.b16 %v954
        %v963 = vunpack.c.l.b16 %v955
        %v964 = vpack.c.b16 %v961, %v960
        %v965 = vpack.c.b16 %v963, %v962
        %v969 = vsel %vm871, %v951, 0
        %971 = vmatpush.bf16.msra.mxu0 0
        %972 = vmatpush.bf16.msra.mxu0 0
        %973 = vmatpush.bf16.msra.mxu0 0
        %974 = vmatpush.bf16.msra.mxu0 0
        %975 = vmatpush.bf16.msra.mxu0 0
        %976 = vmatpush.bf16.msra.mxu0 0
        %977 = vmatpush.bf16.msra.mxu0 %v965
        %978 = vmatpush.bf16.msra.mxu0 %v964
        %979 = vmatmul.bf16.gmra.mxu0 %v969
        %v980 = vpop.f32.mrf.mxu0
        %v981 = vadd.f32 0.0, %v980
        %v982 = vpop.f32.mrf.mxu0
        %983 = vdwg.mxu0
        %985 = vrot.lane.b32.xlu0 %v948, 96
        %v986 = vpop.permute.xlu0 %985
        %989 = vrot.lane.b32.xlu0 %v981, 16
        %v990 = vpop.permute.xlu0 %989
        %vm992 = vcmask 130048
        %v993 = vsel %vm992, %v986, %v990
        %994 = vrot.lane.b32.xlu0 %v948, 80
        %v995 = vpop.permute.xlu0 %994
        %v997 = vsel %vm992, %v995, %v981
        %v998 = vld [vmem:[#allocation11] sm:$0xff]
        %v999 = vld [vmem:[#allocation13] sm:$0xff]
        %v1000 = vld [vmem:[%s6] sm:$0xff]
        %v1001 = vld [vmem:[%s6 + $0x8] sm:$0xff]
        %v1002 = vld [vmem:[%s6 + $0x10] sm:$0xff]
        %v1003 = vld [vmem:[%s6 + $0x18] sm:$0xff]
        %v1004 = vmul.f32 %v948, %v998
        %v1005 = vsel %vm871, %v948, 0
        %1007 = vmatpush.msra.mxu0 0.0
        %1008 = vmatpush.msra.mxu0 0.0
        %1009 = vmatpush.msra.mxu0 0.0
        %1010 = vmatpush.msra.mxu0 0.0
        %1011 = vmatpush.msra.mxu0 0.0
        %1012 = vmatpush.msra.mxu0 0.0
        %1013 = vmatpush.msra.mxu0 0.0
        %1014 = vmatpush.msra.mxu0 0.0
        %1015 = vmatpush.msra.mxu0 0.0
        %1016 = vmatpush.msra.mxu0 0.0
        %1017 = vmatpush.msra.mxu0 0.0
        %1018 = vmatpush.msra.mxu0 0.0
        %1019 = vmatpush.msra.mxu0 %v1003
        %1020 = vmatpush.msra.mxu0 %v1002
        %1021 = vmatpush.msra.mxu0 %v1001
        %1022 = vmatpush.msra.mxu0 %v1000
        %1023 = vmatmul.f32.gmra.mxu0 %v1005
        %v1024 = vpop.f32.mrf.mxu0
        %v1025 = vadd.f32 0.0, %v1024
        %1026 = vdwg.mxu0
        %v1027 = vmul.f32 %v1025, %v999
        %v1028 = vadd.f32 %v1004, %v1027
        %v1029 = vmul.f32 %v993, %v998
        %v1031 = vsel %vm871, %v993, 0
        %1033 = vmatpush.msra.mxu0 0.0
        %1034 = vmatpush.msra.mxu0 0.0
        %1035 = vmatpush.msra.mxu0 0.0
        %1036 = vmatpush.msra.mxu0 0.0
        %1037 = vmatpush.msra.mxu0 0.0
        %1038 = vmatpush.msra.mxu0 0.0
        %1039 = vmatpush.msra.mxu0 0.0
        %1040 = vmatpush.msra.mxu0 0.0
        %1041 = vmatpush.msra.mxu0 0.0
        %1042 = vmatpush.msra.mxu0 0.0
        %1043 = vmatpush.msra.mxu0 0.0
        %1044 = vmatpush.msra.mxu0 0.0
        %1045 = vmatpush.msra.mxu0 %v1003
        %1046 = vmatpush.msra.mxu0 %v1002
        %1047 = vmatpush.msra.mxu0 %v1001
        %1048 = vmatpush.msra.mxu0 %v1000
        %1049 = vmatmul.f32.gmra.mxu0 %v1031
        %v1050 = vpop.f32.mrf.mxu0
        %v1051 = vadd.f32 0.0, %v1050
        %1052 = vdwg.mxu0
        %v1053 = vmul.f32 %v1051, %v999
        %v1054 = vadd.f32 %v1029, %v1053
        %v1055 = vpack.c.bf16 %v1028, %v1028
        %v1056 = vpack.c.bf16 %v1054, %v1054
        %v1057 = vpack.c.bf16 %v997, %v997
        %vm1058 = vcmask 64512
        %v1060 = vsel %vm1058, %v1055, 0
        %v1063 = vsel %vm1058, %v1056, 0
        %1065 = vmatpush.bf16.xpose.msra.mxu0 0
        %1066 = vmatpush.bf16.xpose.msra.mxu0 0
        %1067 = vmatpush.bf16.xpose.msra.mxu0 0
        %1068 = vmatpush.bf16.xpose.msra.mxu0 0
        %1069 = vmatpush.bf16.xpose.msra.mxu0 0
        %1070 = vmatpush.bf16.xpose.msra.mxu0 0
        %1071 = vmatpush.bf16.xpose.msra.mxu0 0
        %1072 = vmatpush.bf16.xpose.msra.mxu0 %v1063
        %1073 = vmatmul.bf16.gmra.mxu0 %v1060
        %v1074 = vpop.f32.mrf.mxu0
        %v1075 = vadd.f32 0.0, %v1074
        %v1076 = vpop.f32.mrf.mxu0
        %1077 = vdwg.mxu0
        %v1078 = vmul.f32 %v1075, 0.35355338
        %v1079 = vsel %vm1058, %v1078, -inf
        %1080 = vmax.xlane.f32.xlu0 %v1079
        %v1081 = vpop.xlane.xlu0 %1080
        %v1082 = vsub.f32 %v1078, %v1081
        %v1083 = vmul.f32 %v1082, 1.442695
        %v1084 = vpow.pop %v1083
        %v1085 = vsel %vm1058, %v1084, 0.0
        %1086 = vadd.xlane.f32.xlu0 %v1085
        %v1087 = vpop.xlane.xlu0 %1086
        %v1088 = vrcp.pop %v1087
        %v1089 = vmul.f32 %v1087, %v1088
        %v1090 = vsub.f32 1.0, %v1089
        %v1091 = vmul.f32 %v1088, %v1090
        %v1092 = vadd.f32 %v1088, %v1091
        %vm1093 = vweird.f32 %v1087
        %vm1094 = vweird.f32 %v1088
        %vm1095 = vmor %vm1093, %vm1094
        %v1096 = vsel %vm1095, %v1088, %v1092
        %v1097 = vand.u32 2147483647, %v1087
        %vm1098 = vcmp.eq.f32.partialorder %v1097, 8.507059e+37
        %v1099 = vand.u32 %v1087, 2147483648
        %v1100 = vor.u32 1.1754944e-38, %v1099
        %v1101 = vsel %vm1098, %v1100, %v1096
        %v1102 = vmul.f32 %v1084, %v1101
        %v1103 = vpack.c.bf16 %v1102, %v1102
        %v1105 = vsel %vm1058, %v1103, 0
        %vm1107 = vcmask 1043456
        %v1109 = vsel %vm1107, %v1057, 0
        %1111 = vmatpush.bf16.msra.mxu0 0
        %1112 = vmatpush.bf16.msra.mxu0 0
        %1113 = vmatpush.bf16.msra.mxu0 0
        %1114 = vmatpush.bf16.msra.mxu0 0
        %1115 = vmatpush.bf16.msra.mxu0 0
        %1116 = vmatpush.bf16.msra.mxu0 0
        %1117 = vmatpush.bf16.msra.mxu0 0
        %1118 = vmatpush.bf16.msra.mxu0 %v1109
        %1119 = vmatmul.bf16.gmra.mxu0 %v1105
        %v1120 = vpop.f32.mrf.mxu0
        %v1121 = vadd.f32 0.0, %v1120
        %v1122 = vpop.f32.mrf.mxu0
        %1123 = vdwg.mxu0
        %1125 = vrot.lane.b32.xlu0 %v1055, 120
        %v1126 = vpop.permute.xlu0 %1125
        %1128 = vrot.lane.b32.xlu0 %v1056, 120
        %v1129 = vpop.permute.xlu0 %1128
        %v1131 = vsel %vm1058, %v1126, 0
        %v1134 = vsel %vm1058, %v1129, 0
        %1136 = vmatpush.bf16.xpose.msra.mxu0 0
        %1137 = vmatpush.bf16.xpose.msra.mxu0 0
        %1138 = vmatpush.bf16.xpose.msra.mxu0 0
        %1139 = vmatpush.bf16.xpose.msra.mxu0 0
        %1140 = vmatpush.bf16.xpose.msra.mxu0 0
        %1141 = vmatpush.bf16.xpose.msra.mxu0 0
        %1142 = vmatpush.bf16.xpose.msra.mxu0 0
        %1143 = vmatpush.bf16.xpose.msra.mxu0 %v1134
        %1144 = vmatmul.bf16.gmra.mxu0 %v1131
        %v1145 = vpop.f32.mrf.mxu0
        %v1146 = vadd.f32 0.0, %v1145
        %v1147 = vpop.f32.mrf.mxu0
        %1148 = vdwg.mxu0
        %v1149 = vmul.f32 %v1146, 0.35355338
        %v1150 = vsel %vm1058, %v1149, -inf
        %1151 = vmax.xlane.f32.xlu0 %v1150
        %v1152 = vpop.xlane.xlu0 %1151
        %v1153 = vsub.f32 %v1149, %v1152
        %v1154 = vmul.f32 %v1153, 1.442695
        %v1155 = vpow.pop %v1154
        %v1156 = vsel %vm1058, %v1155, 0.0
        %1157 = vadd.xlane.f32.xlu0 %v1156
        %v1158 = vpop.xlane.xlu0 %1157
        %v1159 = vrcp.pop %v1158
        %v1160 = vmul.f32 %v1158, %v1159
        %v1161 = vsub.f32 1.0, %v1160
        %v1162 = vmul.f32 %v1159, %v1161
        %v1163 = vadd.f32 %v1159, %v1162
        %vm1164 = vweird.f32 %v1158
        %vm1165 = vweird.f32 %v1159
        %vm1166 = vmor %vm1164, %vm1165
        %v1167 = vsel %vm1166, %v1159, %v1163
        %v1168 = vand.u32 2147483647, %v1158
        %vm1169 = vcmp.eq.f32.partialorder %v1168, 8.507059e+37
        %v1170 = vand.u32 %v1158, 2147483648
        %v1171 = vor.u32 1.1754944e-38, %v1170
        %v1172 = vsel %vm1169, %v1171, %v1167
        %v1173 = vmul.f32 %v1155, %v1172
        %v1174 = vpack.c.bf16 %v1173, %v1173
        %1176 = vrot.lane.b32.xlu0 %v1057, 120
        %v1177 = vpop.permute.xlu0 %1176
        %v1179 = vsel %vm1058, %v1174, 0
        %v1182 = vsel %vm1107, %v1177, 0
        %1184 = vmatpush.bf16.msra.mxu0 0
        %1185 = vmatpush.bf16.msra.mxu0 0
        %1186 = vmatpush.bf16.msra.mxu0 0
        %1187 = vmatpush.bf16.msra.mxu0 0
        %1188 = vmatpush.bf16.msra.mxu0 0
        %1189 = vmatpush.bf16.msra.mxu0 0
        %1190 = vmatpush.bf16.msra.mxu0 0
        %1191 = vmatpush.bf16.msra.mxu0 %v1182
        %1192 = vmatmul.bf16.gmra.mxu0 %v1179
        %v1193 = vpop.f32.mrf.mxu0
        %v1194 = vadd.f32 0.0, %v1193
        %v1195 = vpop.f32.mrf.mxu0
        %1196 = vdwg.mxu0
        %1197 = vrot.lane.b32.xlu0 %v1055, 112
        %v1198 = vpop.permute.xlu0 %1197
        %1199 = vrot.lane.b32.xlu0 %v1056, 112
        %v1200 = vpop.permute.xlu0 %1199
        %v1202 = vsel %vm1058, %v1198, 0
        %v1205 = vsel %vm1058, %v1200, 0
        %1207 = vmatpush.bf16.xpose.msra.mxu0 0
        %1208 = vmatpush.bf16.xpose.msra.mxu0 0
        %1209 = vmatpush.bf16.xpose.msra.mxu0 0
        %1210 = vmatpush.bf16.xpose.msra.mxu0 0
        %1211 = vmatpush.bf16.xpose.msra.mxu0 0
        %1212 = vmatpush.bf16.xpose.msra.mxu0 0
        %1213 = vmatpush.bf16.xpose.msra.mxu0 0
        %1214 = vmatpush.bf16.xpose.msra.mxu0 %v1205
        %1215 = vmatmul.bf16.gmra.mxu0 %v1202
        %v1216 = vpop.f32.mrf.mxu0
        %v1217 = vadd.f32 0.0, %v1216
        %v1218 = vpop.f32.mrf.mxu0
        %1219 = vdwg.mxu0
        %v1220 = vmul.f32 %v1217, 0.35355338
        %v1221 = vsel %vm1058, %v1220, -inf
        %1222 = vmax.xlane.f32.xlu0 %v1221
        %v1223 = vpop.xlane.xlu0 %1222
        %v1224 = vsub.f32 %v1220, %v1223
        %v1225 = vmul.f32 %v1224, 1.442695
        %v1226 = vpow.pop %v1225
        %v1227 = vsel %vm1058, %v1226, 0.0
        %1228 = vadd.xlane.f32.xlu0 %v1227
        %v1229 = vpop.xlane.xlu0 %1228
        %v1230 = vrcp.pop %v1229
        %v1231 = vmul.f32 %v1229, %v1230
        %v1232 = vsub.f32 1.0, %v1231
        %v1233 = vmul.f32 %v1230, %v1232
        %v1234 = vadd.f32 %v1230, %v1233
        %vm1235 = vweird.f32 %v1229
        %vm1236 = vweird.f32 %v1230
        %vm1237 = vmor %vm1235, %vm1236
        %v1238 = vsel %vm1237, %v1230, %v1234
        %v1239 = vand.u32 2147483647, %v1229
        %vm1240 = vcmp.eq.f32.partialorder %v1239, 8.507059e+37
        %v1241 = vand.u32 %v1229, 2147483648
        %v1242 = vor.u32 1.1754944e-38, %v1241
        %v1243 = vsel %vm1240, %v1242, %v1238
        %v1244 = vmul.f32 %v1226, %v1243
        %v1245 = vpack.c.bf16 %v1244, %v1244
        %1246 = vrot.lane.b32.xlu0 %v1057, 112
        %v1247 = vpop.permute.xlu0 %1246
        %v1249 = vsel %vm1058, %v1245, 0
        %v1252 = vsel %vm1107, %v1247, 0
        %1254 = vmatpush.bf16.msra.mxu0 0
        %1255 = vmatpush.bf16.msra.mxu0 0
        %1256 = vmatpush.bf16.msra.mxu0 0
        %1257 = vmatpush.bf16.msra.mxu0 0
        %1258 = vmatpush.bf16.msra.mxu0 0
        %1259 = vmatpush.bf16.msra.mxu0 0
        %1260 = vmatpush.bf16.msra.mxu0 0
        %1261 = vmatpush.bf16.msra.mxu0 %v1252
        %1262 = vmatmul.bf16.gmra.mxu0 %v1249
        %v1263 = vpop.f32.mrf.mxu0
        %v1264 = vadd.f32 0.0, %v1263
        %v1265 = vpop.f32.mrf.mxu0
        %1266 = vdwg.mxu0
        %1267 = vrot.lane.b32.xlu0 %v1055, 104
        %v1268 = vpop.permute.xlu0 %1267
        %1269 = vrot.lane.b32.xlu0 %v1056, 104
        %v1270 = vpop.permute.xlu0 %1269
        %v1272 = vsel %vm1058, %v1268, 0
        %v1275 = vsel %vm1058, %v1270, 0
        %1277 = vmatpush.bf16.xpose.msra.mxu0 0
        %1278 = vmatpush.bf16.xpose.msra.mxu0 0
        %1279 = vmatpush.bf16.xpose.msra.mxu0 0
        %1280 = vmatpush.bf16.xpose.msra.mxu0 0
        %1281 = vmatpush.bf16.xpose.msra.mxu0 0
        %1282 = vmatpush.bf16.xpose.msra.mxu0 0
        %1283 = vmatpush.bf16.xpose.msra.mxu0 0
        %1284 = vmatpush.bf16.xpose.msra.mxu0 %v1275
        %1285 = vmatmul.bf16.gmra.mxu0 %v1272
        %v1286 = vpop.f32.mrf.mxu0
        %v1287 = vadd.f32 0.0, %v1286
        %v1288 = vpop.f32.mrf.mxu0
        %1289 = vdwg.mxu0
        %v1290 = vmul.f32 %v1287, 0.35355338
        %v1291 = vsel %vm1058, %v1290, -inf
        %1292 = vmax.xlane.f32.xlu0 %v1291
        %v1293 = vpop.xlane.xlu0 %1292
        %v1294 = vsub.f32 %v1290, %v1293
        %v1295 = vmul.f32 %v1294, 1.442695
        %v1296 = vpow.pop %v1295
        %v1297 = vsel %vm1058, %v1296, 0.0
        %1298 = vadd.xlane.f32.xlu0 %v1297
        %v1299 = vpop.xlane.xlu0 %1298
        %v1300 = vrcp.pop %v1299
        %v1301 = vmul.f32 %v1299, %v1300
        %v1302 = vsub.f32 1.0, %v1301
        %v1303 = vmul.f32 %v1300, %v1302
        %v1304 = vadd.f32 %v1300, %v1303
        %vm1305 = vweird.f32 %v1299
        %vm1306 = vweird.f32 %v1300
        %vm1307 = vmor %vm1305, %vm1306
        %v1308 = vsel %vm1307, %v1300, %v1304
        %v1309 = vand.u32 2147483647, %v1299
        %vm1310 = vcmp.eq.f32.partialorder %v1309, 8.507059e+37
        %v1311 = vand.u32 %v1299, 2147483648
        %v1312 = vor.u32 1.1754944e-38, %v1311
        %v1313 = vsel %vm1310, %v1312, %v1308
        %v1314 = vmul.f32 %v1296, %v1313
        %v1315 = vpack.c.bf16 %v1314, %v1314
        %1316 = vrot.lane.b32.xlu0 %v1057, 104
        %v1317 = vpop.permute.xlu0 %1316
        %v1319 = vsel %vm1058, %v1315, 0
        %v1322 = vsel %vm1107, %v1317, 0
        %1324 = vmatpush.bf16.msra.mxu0 0
        %1325 = vmatpush.bf16.msra.mxu0 0
        %1326 = vmatpush.bf16.msra.mxu0 0
        %1327 = vmatpush.bf16.msra.mxu0 0
        %1328 = vmatpush.bf16.msra.mxu0 0
        %1329 = vmatpush.bf16.msra.mxu0 0
        %1330 = vmatpush.bf16.msra.mxu0 0
        %1331 = vmatpush.bf16.msra.mxu0 %v1322
        %1332 = vmatmul.bf16.gmra.mxu0 %v1319
        %v1333 = vpop.f32.mrf.mxu0
        %v1334 = vadd.f32 0.0, %v1333
        %v1335 = vpop.f32.mrf.mxu0
        %1336 = vdwg.mxu0
        %1338 = vrot.lane.b32.xlu0 %v1194, 8
        %v1339 = vpop.permute.xlu0 %1338
        %1342 = vrot.lane.b32.xlu0 %v1264, 16
        %v1343 = vpop.permute.xlu0 %1342
        %1346 = vrot.lane.b32.xlu0 %v1334, 24
        %v1347 = vpop.permute.xlu0 %1346
        %v1349 = vsel %vm1058, %v1121, %v1339
        %v1350 = vsel %vm992, %v1349, %v1343
        %vm1351 = vcmask 195584
        %v1352 = vsel %vm1351, %v1350, %v1347
        %v1353 = vpack.c.bf16 %v1352, %v1352
        %v1354 = vld [vmem:[#allocation14] sm:$0xf]
        %v1355 = vld [vmem:[#allocation14 + $0x4] sm:$0xf]
        %v1356 = vld [vmem:[#allocation14 + $0x8] sm:$0xf]
        %v1357 = vld [vmem:[#allocation14 + $0xc] sm:$0xf]
        %v1362 = vunpack.c.l.b16 %v1354
        %v1363 = vunpack.c.l.b16 %v1355
        %v1364 = vunpack.c.l.b16 %v1356
        %v1365 = vunpack.c.l.b16 %v1357
        %v1366 = vpack.c.b16 %v1363, %v1362
        %v1367 = vpack.c.b16 %v1365, %v1364
        %v1371 = vsel %vm871, %v1353, 0
        %1373 = vmatpush.bf16.msra.mxu0 0
        %1374 = vmatpush.bf16.msra.mxu0 0
        %1375 = vmatpush.bf16.msra.mxu0 0
        %1376 = vmatpush.bf16.msra.mxu0 0
        %1377 = vmatpush.bf16.msra.mxu0 0
        %1378 = vmatpush.bf16.msra.mxu0 0
        %1379 = vmatpush.bf16.msra.mxu0 %v1367
        %1380 = vmatpush.bf16.msra.mxu0 %v1366
        %1381 = vmatmul.bf16.gmra.mxu0 %v1371
        %v1382 = vpop.f32.mrf.mxu0
        %v1383 = vadd.f32 0.0, %v1382
        %v1384 = vpop.f32.mrf.mxu0
        %1385 = vdwg.mxu0
        %v1386 = vadd.f32 %v852, %v1383
        %v1387 = vld [vmem:[#allocation16] sm:$0xf]
        %v1388 = vld [vmem:[#allocation16 + $0x4] sm:$0xf]
        %v1389 = vld [vmem:[#allocation16 + $0x8] sm:$0xf]
        %v1390 = vld [vmem:[#allocation16 + $0xc] sm:$0xf]
        %v1391 = vld [vmem:[#allocation17] sm:$0x1]
        %v1393 = vperm.slane %v1391, 0
        %v1399 = vunpack.c.l.b16 %v1387
        %v1400 = vunpack.c.l.b16 %v1388
        %v1401 = vunpack.c.l.b16 %v1389
        %v1402 = vunpack.c.l.b16 %v1390
        %v1403 = vpack.c.b16 %v1400, %v1399
        %v1404 = vpack.c.b16 %v1402, %v1401
        %1407 = vmatpush.bf16.msra.mxu0 0
        %1408 = vmatpush.bf16.msra.mxu0 0
        %1409 = vmatpush.bf16.msra.mxu0 0
        %1410 = vmatpush.bf16.msra.mxu0 0
        %1411 = vmatpush.bf16.msra.mxu0 0
        %1412 = vmatpush.bf16.msra.mxu0 0
        %1413 = vmatpush.bf16.msra.mxu0 %v1404
        %1414 = vmatpush.bf16.msra.mxu0 %v1403
        %1415 = vmatmul.bf16.gmra.mxu0 %v969
        %v1416 = vpop.f32.mrf.mxu0
        %v1417 = vadd.f32 %v1393, %v1416
        %v1418 = vpop.f32.mrf.mxu0
        %1419 = vdwg.mxu0
        %v1420 = vxor.u32 %v1417, 2147483648
        %v1421 = vmul.f32 %v1420, 1.442695
        %v1422 = vpow.pop %v1421
        %v1423 = vadd.f32 %v1422, 1.0
        %v1424 = vrcp.pop %v1423
        %v1425 = vmul.f32 %v1423, %v1424
        %v1426 = vsub.f32 1.0, %v1425
        %v1427 = vmul.f32 %v1424, %v1426
        %v1428 = vadd.f32 %v1424, %v1427
        %vm1429 = vweird.f32 %v1423
        %vm1430 = vweird.f32 %v1424
        %vm1431 = vmor %vm1429, %vm1430
        %v1432 = vsel %vm1431, %v1424, %v1428
        %v1433 = vand.u32 2147483647, %v1423
        %vm1434 = vcmp.eq.f32.partialorder %v1433, 8.507059e+37
        %v1435 = vand.u32 %v1423, 2147483648
        %v1436 = vor.u32 1.1754944e-38, %v1435
        %v1437 = vsel %vm1434, %v1436, %v1432
        %v1438 = vmul.f32 1.0, %v1437
        %v1439 = vld [vmem:[#allocation19] sm:$0xf]
        %v1440 = vld [vmem:[#allocation19 + $0x4] sm:$0xf]
        %v1441 = vld [vmem:[#allocation19 + $0x8] sm:$0xf]
        %v1442 = vld [vmem:[#allocation19 + $0xc] sm:$0xf]
        %v1447 = vunpack.c.l.b16 %v1439
        %v1448 = vunpack.c.l.b16 %v1440
        %v1449 = vunpack.c.l.b16 %v1441
        %v1450 = vunpack.c.l.b16 %v1442
        %v1451 = vpack.c.b16 %v1448, %v1447
        %v1452 = vpack.c.b16 %v1450, %v1449
        %1455 = vmatpush.bf16.msra.mxu0 0
        %1456 = vmatpush.bf16.msra.mxu0 0
        %1457 = vmatpush.bf16.msra.mxu0 0
        %1458 = vmatpush.bf16.msra.mxu0 0
        %1459 = vmatpush.bf16.msra.mxu0 0
        %1460 = vmatpush.bf16.msra.mxu0 0
        %1461 = vmatpush.bf16.msra.mxu0 %v1452
        %1462 = vmatpush.bf16.msra.mxu0 %v1451
        %1463 = vmatmul.bf16.gmra.mxu0 %v969
        %v1464 = vpop.f32.mrf.mxu0
        %v1465 = vadd.f32 0.0, %v1464
        %v1466 = vpop.f32.mrf.mxu0
        %1467 = vdwg.mxu0
        %v1468 = vmul.f32 %v1438, %v1465
        %v1469 = vadd.f32 %v1386, %v1468
        %v1470 = vmul.f32 %v1469, %v1469
        %v1471 = vsel %vm871, %v1470, 0.0
        %1472 = vadd.xlane.f32.xlu0 %v1471
        %v1473 = vpop.xlane.xlu0 %1472
        %v1474 = vmul.f32 %v1473, %v899
        %v1475 = vadd.f32 %v1474, 1e-06
        %v1476 = vrsqrt.pop %v1475
        %v1477 = vmul.f32 %v1476, %v1475
        %v1478 = vmul.f32 %v1477, %v1476
        %v1479 = vmul.f32 0.5, %v1478
        %v1480 = vsub.f32 1.5, %v1479
        %v1481 = vmul.f32 %v1476, %v1480
        %vm1482 = vweird.f32 %v1475
        %vm1483 = vweird.f32 %v1476
        %vm1484 = vmor %vm1482, %vm1483
        %v1485 = vsel %vm1484, %v1476, %v1481
        %v1486 = vld [vmem:[#allocation20] sm:$0x1]
        %v1487 = vadd.f32 %v1486, 1.0
        %v1488 = vmul.f32 %v1469, %v1485
        %v1490 = vperm.slane %v1487, 0
        %v1492 = vmul.f32 %v1488, %v1490
        %v1493 = vadd.f32 %v1469, %v1492
        %v1494 = vmul.f32 %v1493, %v1493
        %v1495 = vsel %vm871, %v1494, 0.0
        %1496 = vadd.xlane.f32.xlu0 %v1495
        %v1497 = vpop.xlane.xlu0 %1496
        %v1498 = vmul.f32 %v1497, %v899
        %v1499 = vadd.f32 %v1498, 1e-06
        %v1500 = vrsqrt.pop %v1499
        %v1501 = vmul.f32 %v1500, %v1499
        %v1502 = vmul.f32 %v1501, %v1500
        %v1503 = vmul.f32 0.5, %v1502
        %v1504 = vsub.f32 1.5, %v1503
        %v1505 = vmul.f32 %v1500, %v1504
        %vm1506 = vweird.f32 %v1499
        %vm1507 = vweird.f32 %v1500
        %vm1508 = vmor %vm1506, %vm1507
        %v1509 = vsel %vm1508, %v1500, %v1505
        %v1510 = vld [vmem:[#allocation22] sm:$0x1]
        %v1511 = vadd.f32 %v1510, 1.0
        %v1512 = vmul.f32 %v1493, %v1509
        %v1514 = vperm.slane %v1511, 0
        %v1516 = vmul.f32 %v1512, %v1514
        %v1517 = vpack.c.bf16 %v1516, %v1516
        %v1518 = vld [vmem:[#allocation23] sm:$0xf]
        %v1519 = vld [vmem:[#allocation23 + $0x4] sm:$0xf]
        %v1520 = vld [vmem:[#allocation23 + $0x8] sm:$0xf]
        %v1521 = vld [vmem:[#allocation23 + $0xc] sm:$0xf]
        %v1526 = vunpack.c.l.b16 %v1518
        %v1527 = vunpack.c.l.b16 %v1519
        %v1528 = vunpack.c.l.b16 %v1520
        %v1529 = vunpack.c.l.b16 %v1521
        %v1530 = vpack.c.b16 %v1527, %v1526
        %v1531 = vpack.c.b16 %v1529, %v1528
        %v1535 = vsel %vm871, %v1517, 0
        %1537 = vmatpush.bf16.msra.mxu0 0
        %1538 = vmatpush.bf16.msra.mxu0 0
        %1539 = vmatpush.bf16.msra.mxu0 0
        %1540 = vmatpush.bf16.msra.mxu0 0
        %1541 = vmatpush.bf16.msra.mxu0 0
        %1542 = vmatpush.bf16.msra.mxu0 0
        %1543 = vmatpush.bf16.msra.mxu0 %v1531
        %1544 = vmatpush.bf16.msra.mxu0 %v1530
        %1545 = vmatmul.bf16.gmra.mxu0 %v1535
        %v1546 = vpop.f32.mrf.mxu0
        %v1547 = vadd.f32 0.0, %v1546
        %v1548 = vpop.f32.mrf.mxu0
        %1549 = vdwg.mxu0
        %v1550 = vmul.f32 %v1547, %v1547
        %v1551 = vmul.f32 %v1547, %v1550
        %v1552 = vmul.f32 %v1551, 0.044715
        %v1553 = vadd.f32 %v1547, %v1552
        %v1554 = vmul.f32 %v1553, 0.7978846
        %v1555 = vtanh.pop %v1554
        %v1556 = vadd.f32 %v1555, 1.0
        %v1557 = vmul.f32 %v1556, 0.5
        %v1558 = vmul.f32 %v1547, %v1557
        %v1559 = vld [vmem:[%s16] sm:$0xf]
        %v1560 = vld [vmem:[%s16 + $0x4] sm:$0xf]
        %v1561 = vld [vmem:[%s16 + $0x8] sm:$0xf]
        %v1562 = vld [vmem:[%s16 + $0xc] sm:$0xf]
        %v1567 = vunpack.c.l.b16 %v1559
        %v1568 = vunpack.c.l.b16 %v1560
        %v1569 = vunpack.c.l.b16 %v1561
        %v1570 = vunpack.c.l.b16 %v1562
        %v1571 = vpack.c.b16 %v1568, %v1567
        %v1572 = vpack.c.b16 %v1570, %v1569
        %1575 = vmatpush.bf16.msra.mxu0 0
        %1576 = vmatpush.bf16.msra.mxu0 0
        %1577 = vmatpush.bf16.msra.mxu0 0
        %1578 = vmatpush.bf16.msra.mxu0 0
        %1579 = vmatpush.bf16.msra.mxu0 0
        %1580 = vmatpush.bf16.msra.mxu0 0
        %1581 = vmatpush.bf16.msra.mxu0 %v1572
        %1582 = vmatpush.bf16.msra.mxu0 %v1571
        %1583 = vmatmul.bf16.gmra.mxu0 %v1535
        %v1584 = vpop.f32.mrf.mxu0
        %v1585 = vadd.f32 0.0, %v1584
        %v1586 = vpop.f32.mrf.mxu0
        %1587 = vdwg.mxu0
        %v1588 = vmul.f32 %v1558, %v1585
        %v1589 = vpack.c.bf16 %v1588, %v1588
        %v1590 = vld [vmem:[%s17] sm:$0xf]
        %v1591 = vld [vmem:[%s17 + $0x4] sm:$0xf]
        %v1592 = vld [vmem:[%s17 + $0x8] sm:$0xf]
        %v1593 = vld [vmem:[%s17 + $0xc] sm:$0xf]
        %v1594 = vld [vmem:[%s17 + $0x10] sm:$0xf]
        %v1595 = vld [vmem:[%s17 + $0x14] sm:$0xf]
        %v1596 = vld [vmem:[%s17 + $0x18] sm:$0xf]
        %v1597 = vld [vmem:[%s17 + $0x1c] sm:$0xf]
        %v1606 = vunpack.c.l.b16 %v1590
        %v1607 = vunpack.c.l.b16 %v1591
        %v1608 = vunpack.c.l.b16 %v1592
        %v1609 = vunpack.c.l.b16 %v1593
        %v1610 = vunpack.c.l.b16 %v1594
        %v1611 = vunpack.c.l.b16 %v1595
        %v1612 = vunpack.c.l.b16 %v1596
        %v1613 = vunpack.c.l.b16 %v1597
        %v1614 = vpack.c.b16 %v1607, %v1606
        %v1615 = vpack.c.b16 %v1609, %v1608
        %v1616 = vpack.c.b16 %v1611, %v1610
        %v1617 = vpack.c.b16 %v1613, %v1612
        %vm1622 = vcmask 523264
        %v1624 = vsel %vm1622, %v1589, 0
        %1626 = vmatpush.bf16.msra.mxu0 0
        %1627 = vmatpush.bf16.msra.mxu0 0
        %1628 = vmatpush.bf16.msra.mxu0 0
        %1629 = vmatpush.bf16.msra.mxu0 0
        %1630 = vmatpush.bf16.msra.mxu0 %v1617
        %1631 = vmatpush.bf16.msra.mxu0 %v1616
        %1632 = vmatpush.bf16.msra.mxu0 %v1615
        %1633 = vmatpush.bf16.msra.mxu0 %v1614
        %1634 = vmatmul.bf16.gmra.mxu0 %v1624
        %v1635 = vpop.f32.mrf.mxu0
        %v1636 = vadd.f32 0.0, %v1635
        %v1637 = vpop.f32.mrf.mxu0
        %1638 = vdwg.mxu0
        %v1639 = vadd.f32 %v1493, %v1636
        %1640 = vst.msk [vmem:[%s839] sm:$0xff] %vm871, %v1639
        %s1641 = sand.u32 %s443, 1
        %s1642 = scalar_lea.sflag [#allocation4], %s1641
        %s1643 = sand.u32 %s443, 1
        %s1644 = smul.addr %s1643, 8
        %s1645 = scalar_lea.vmem [#allocation25], %s1644
        %s1646 = sand.u32 %s469, 1
        %s1647 = scalar_lea.sflag [#allocation27], %s1646
        %s1648 = sand.u32 %s469, 1
        %s1649 = smul.addr %s1648, 8
        %s1650 = scalar_lea.vmem [#allocation26], %s1649
        // Predicated region
        $region149: #{module_block_forward.1} parent=91 // pred_check
          %p1651 = pneg %p453
        $region150: #{module_block_forward.1} parent=91 // pred_check_branch
          %1653 = sbr.rel (%p1651) target = $region152
        $region151: #{module_block_forward.1} parent=91 // pred_region
          %1655 = vsyncadd %s1642, 0
          %s1656 = smul.addr %s47, 8
          %s1657 = scalar_lea.hbm %s18, %s1656
          %s1659 = sshll.u32 %s1645, 4
          %s1660 = int_to_ptr.vmem [resolvable:$true] %s1659
          %s1661 = sshll.u32 %s1657, 4
          %s1662 = int_to_ptr.hbm [resolvable:$true] %s1661
          %1664 = dma.vmem_to_hbm [thread:$0]  %s1660, 128, %s1662, %s1642
        $region152: #{module_block_forward.1} parent=91 // pred_fallthru
          _
        // Predicated region
        $region153: #{module_block_forward.1} parent=91 // pred_check
          %p1665 = pneg %p479
        $region154: #{module_block_forward.1} parent=91 // pred_check_branch
          %1667 = sbr.rel (%p1665) target = $region156
        $region155: #{module_block_forward.1} parent=91 // pred_region
          %1669 = vsyncadd %s1647, 0
          %s1670 = smul.addr %s47, 8
          %s1671 = scalar_lea.hbm %s19, %s1670
          %s1673 = sshll.u32 %s1650, 4
          %s1674 = int_to_ptr.vmem [resolvable:$true] %s1673
          %s1675 = sshll.u32 %s1671, 4
          %s1676 = int_to_ptr.hbm [resolvable:$true] %s1675
          %1678 = dma.vmem_to_hbm [thread:$0]  %s1674, 128, %s1676, %s1647
        $region156: #{module_block_forward.1} parent=91 // pred_fallthru
          _
      $region92: #{module_block_forward.1} parent=5 // pred_fallthru
        _
      %p1679 = scmp.le.s32.totalorder 2, %s42
      // Predicated region
      $region157: #{module_block_forward.1} parent=5 // pred_check
        %p1680 = pneg %p1679
      $region158: #{module_block_forward.1} parent=5 // pred_check_branch
        %1682 = sbr.rel (%p1680) target = $region160
      $region159: #{module_block_forward.1} parent=5 // pred_region
        %s1683 = ssub.s32 %s42, 2
        // Predicated region
        $region161: #{module_block_forward.1} parent=159 // pred_check
          %p1684 = pneg %p459
        $region162: #{module_block_forward.1} parent=159 // pred_check_branch
          %1686 = sbr.rel (%p1684) target = $region164
        $region163: #{module_block_forward.1} parent=159 // pred_region
          %s1687 = sand.u32 %s444, 1
          %s1688 = scalar_lea.sflag [#allocation4], %s1687
          %s1689 = sand.u32 %s444, 1
          %s1690 = smul.addr %s1689, 8
          %s1691 = scalar_lea.vmem [#allocation25], %s1690
          %1693 = dma.done %s1688, 128
        $region164: #{module_block_forward.1} parent=159 // pred_fallthru
          _
        // Predicated region
        $region165: #{module_block_forward.1} parent=159 // pred_check
          %p1694 = pneg %p485
        $region166: #{module_block_forward.1} parent=159 // pred_check_branch
          %1696 = sbr.rel (%p1694) target = $region168
        $region167: #{module_block_forward.1} parent=159 // pred_region
          %s1697 = sand.u32 %s470, 1
          %s1698 = scalar_lea.sflag [#allocation27], %s1697
          %s1699 = sand.u32 %s470, 1
          %s1700 = smul.addr %s1699, 8
          %s1701 = scalar_lea.vmem [#allocation26], %s1700
          %1703 = dma.done %s1698, 128
        $region168: #{module_block_forward.1} parent=159 // pred_fallthru
          _
      $region160: #{module_block_forward.1} parent=5 // pred_fallthru
        _
    $region6: #{module_block_forward.1} parent=1 // loop_footer
      %s46 = sadd.s32 1, %s42
    $region7: #{module_block_forward.1} parent=1 // loop_footer_branch
      %41 = sbr.rel target = $region3
    $region8: #{module_block_forward.1} parent=1 // loop_exit
      _
    %1704 = vsyncpa [#allocation3], 1
    %s1705 = scalar_lea.sflag [#allocation3], 1
    %1706 = vsyncpa %s1705, 1
    %1707 = vsyncpa [#allocation6], 1
    %1708 = vsyncpa [#allocation9], 1
    %1709 = vsyncpa [#allocation12], 1
    %1710 = vsyncpa [#allocation15], 1
    %1711 = vsyncpa [#allocation18], 1
    %1712 = vsyncpa [#allocation21], 1
    %1713 = vsyncpa [#allocation24], 1
    %1714 = vsyncpa [#allocation4], 1
    %s1715 = scalar_lea.sflag [#allocation4], 1
    %1716 = vsyncpa %s1715, 1
    %1717 = vsyncpa [#allocation27], 1
    %s1718 = scalar_lea.sflag [#allocation27], 1
    %1719 = vsyncpa %s1718, 1

</llo_original>
